<compile_context>
chip_gen: v7x
topology: tpu7x:2x2x1
jax: 0.10.0
libtpu: 0.0.40
codegen_flags: <defaults>
</compile_context>

<pallas_src>
import math
import jax
import jax.numpy as jnp
from jax.experimental import pallas as pl
from jax.experimental.pallas import tpu as pltpu

DIM = 32            # general_cfg.dim
TOTAL_QUERIES = 16  # general_cfg.total_queries
BATCH = 2
NV = 64             # voxels per batch sample (fixed for this synthetic run)
MAX_TR = 512        # row-tile cap for the scale-up path (large N streams from HBM)
LN_EPS = 1e-5
# NOTE: projected head dim == input dim (both DIM) here; scale intentionally 1/sqrt(DIM).
ATTN_SCALE = 1.0 / math.sqrt(DIM)


def _xavier(key, shape, dtype=jnp.float32):
    fan_in, fan_out = shape[0], shape[-1]
    limit = math.sqrt(6.0 / (fan_in + fan_out))
    return jax.random.uniform(key, shape, dtype, -limit, limit)


# --------------------------------------------------------------------------------------
# Fused kernel: pos_embed MLP + cross attention + hybrid gate / residual / LayerNorm
#
# Operands (all f32):
#   feat_ref  (TR, C)        voxel features (also the residual)
#   xyz_ref   (TR, 3)        voxel xyz coordinates
#   wmat_ref  (2C, 3C)       block-diagonal [[pe_w2, 0, 0], [0, wq, wu_res_col]]
#   cpack_ref (8+C+Q, 2C)    rows 0..4 : packed vectors (pe_b1|pe_g, pe_be|pe_b2,
#                                         no_g|no_b, w1_r0|w1_r1, w1_r2|bu)
#                            rows 8..8+C-1     : K^T * scale             (C, Q)
#                            rows 8+C..8+C+Q-1 : [V@Wo | V@Wo@wu_out | 0] (Q, 2C)
#   out_ref   (TR, 2C)       [ gated+normed features | positional embedding ]
# --------------------------------------------------------------------------------------
def fused_kernel(feat_ref, xyz_ref, wmat_ref, cpack_ref, out_ref):
    C, Q = DIM, TOTAL_QUERIES

    feat = feat_ref[...].astype(jnp.float32)                 # (TR, C)
    x = xyz_ref[...].astype(jnp.float32)                     # (TR, 3)
    cpack = cpack_ref[...]                                   # (56, 2C)

    # ---- unpack coalesced constants (static slices, zero runtime cost) --------------
    pe_b1 = cpack[0:1, 0:C]
    pe_g = cpack[0:1, C:2 * C]
    pe_be = cpack[1:2, 0:C]
    pe_b2 = cpack[1:2, C:2 * C]
    no_g = cpack[2:3, 0:C]
    no_b = cpack[2:3, C:2 * C]
    w1_0 = cpack[3:4, 0:C]
    w1_1 = cpack[3:4, C:2 * C]
    w1_2 = cpack[4:5, 0:C]
    bu = cpack[4:5, C:C + 1]                                 # (1, 1)
    kT = cpack[8:8 + C, 0:Q]                                 # (C, Q), scale folded in
    vslab = cpack[8 + C:8 + C + Q, :]                        # (Q, 2C): [V@Wo | gate col | 0]

    # ---- (1) pos_embed: Linear(3,C) -> LayerNorm -> ReLU ----------------------------
    # K=3 contraction as three VPU broadcast FMAs instead of a padded MXU pass.
    h = x[:, 0:1] * w1_0 + x[:, 1:2] * w1_1 + x[:, 2:3] * w1_2 + pe_b1
    mu = jnp.mean(h, axis=-1, keepdims=True)
    var = jnp.mean((h - mu) ** 2, axis=-1, keepdims=True)
    h = (h - mu) * jax.lax.rsqrt(var + LN_EPS)
    h = jnp.maximum(h * pe_g + pe_be, 0.0)

    # ---- (2) one block-diagonal matmul: [pe | q-proj | gate_res] --------------------
    hf = jnp.concatenate([h, feat], axis=-1)                 # (TR, 2C)
    y = jnp.dot(hf, wmat_ref[...], preferred_element_type=jnp.float32)   # (TR, 3C)
    pe = y[:, 0:C] + pe_b2                                   # h @ pe_w2 + pe_b2
    qp = y[:, C:2 * C]                                       # feat @ wq
    g_res = y[:, 2 * C:2 * C + 1]                            # feat . wu[:, :C]

    # ---- (3) cross attention over the (batch-invariant) hidden queries --------------
    s = jnp.dot(qp, kT, preferred_element_type=jnp.float32)             # (TR, Q)
    m = jnp.max(s, axis=-1, keepdims=True)
    p = jnp.exp(s - m)
    p = p * pl.reciprocal(jnp.sum(p, axis=-1, keepdims=True), approx=False)
    z = jnp.dot(p, vslab, preferred_element_type=jnp.float32)           # (TR, 2C)
    attn = z[:, 0:C]                                         # (p @ V) @ wo
    g_out = z[:, C:C + 1]                                    # attn . wu[:, C:]

    # ---- (4) learnable hybrid gate + wholy_residual blend + norm_out LayerNorm ------
    gate = jax.nn.sigmoid(g_res + g_out + bu)                # (TR, 1)
    blended = gate * attn + (1.0 - gate) * feat
    mu2 = jnp.mean(blended, axis=-1, keepdims=True)
    var2 = jnp.mean((blended - mu2) ** 2, axis=-1, keepdims=True)
    normed = (blended - mu2) * jax.lax.rsqrt(var2 + LN_EPS)
    feat_out = normed * no_g + no_b

    # single lane-dense store: [features | positional embedding]
    out_ref[...] = jnp.concatenate([feat_out, pe], axis=-1).astype(out_ref.dtype)


def fused_forward(voxel_features, xyz, wmat, cpack):
    N, C = voxel_features.shape
    # Whole problem in one grid step (overhead-bound at this size; no TC split needed).
    # For large point clouds TR caps at MAX_TR rows and the grid streams row tiles.
    TR = N if N <= MAX_TR else MAX_TR
    assert N % TR == 0
    row = lambda i: (i, 0)
    const = lambda i: (0, 0)
    out = pl.pallas_call(
        fused_kernel,
        out_shape=jax.ShapeDtypeStruct((N, 2 * C), jnp.float32),
        grid=(N // TR,),
        in_specs=[
            pl.BlockSpec((TR, C), row),                      # voxel features / residual
            pl.BlockSpec((TR, 3), row),                      # voxel xyz coords
            pl.BlockSpec(wmat.shape, const),                 # block-diag weight slab
            pl.BlockSpec(cpack.shape, const),                # vectors + K^T + V@Wo pack
        ],
        out_specs=pl.BlockSpec((TR, 2 * C), row),
        compiler_params=pltpu.CompilerParams(dimension_semantics=("parallel",)),
    )(voxel_features, xyz, wmat, cpack)
    return out[:, :C], out[:, C:]


# --------------------------------------------------------------------------------------
# Grid-invariant precompute: coalesce 14 tiny constants into two packed operands and
# hoist everything that does not depend on the voxel rows (K^T, V@Wo, gate columns).
# --------------------------------------------------------------------------------------
def build_packs(p):
    C, Q = DIM, TOTAL_QUERIES
    hq = p["hidden_queries"]
    # K^T with attention scale folded in; V projected through the output projection,
    # plus the gate "out" column (V @ wo @ wu_out^T) appended — all batch-invariant.
    kT = (hq @ p["wk"]).T * ATTN_SCALE                       # (C, Q)
    vw = (hq @ p["wv"]) @ p["wo"]                            # (Q, C)
    vg = vw @ p["wu"][0, C:].reshape(C, 1)                   # (Q, 1)

    wmat = jnp.zeros((2 * C, 3 * C), jnp.float32)
    wmat = wmat.at[:C, :C].set(p["pe_w2"])
    wmat = wmat.at[C:, C:2 * C].set(p["wq"])
    wmat = wmat.at[C:, 2 * C:2 * C + 1].set(p["wu"][0, :C].reshape(C, 1))

    cpack = jnp.zeros((8 + C + Q, 2 * C), jnp.float32)
    cpack = cpack.at[0, :C].set(p["pe_b1"])
    cpack = cpack.at[0, C:].set(p["pe_g"])
    cpack = cpack.at[1, :C].set(p["pe_be"])
    cpack = cpack.at[1, C:].set(p["pe_b2"])
    cpack = cpack.at[2, :C].set(p["no_g"])
    cpack = cpack.at[2, C:].set(p["no_b"])
    cpack = cpack.at[3, :C].set(p["pe_w1"][0])
    cpack = cpack.at[3, C:].set(p["pe_w1"][1])
    cpack = cpack.at[4, :C].set(p["pe_w1"][2])
    cpack = cpack.at[4, C].set(p["bu"])
    cpack = cpack.at[8:8 + C, :Q].set(kT)
    cpack = cpack.at[8 + C:, :C].set(vw)
    cpack = cpack.at[8 + C:, C:C + 1].set(vg)
    return wmat, cpack


# --------------------------------------------------------------------------------------
# Module parameters (deterministic, xavier-uniform per _reset_parameters)
# --------------------------------------------------------------------------------------
def init_params(key):
    ks = jax.random.split(key, 10)
    p = {}
    p["hidden_queries"] = _xavier(ks[0], (TOTAL_QUERIES, DIM))
    # pos_embed: Linear(3, dim), LayerNorm(dim), ReLU, Linear(dim, dim)
    p["pe_w1"] = _xavier(ks[1], (3, DIM))
    p["pe_b1"] = jnp.zeros((DIM,), jnp.float32)
    p["pe_g"] = jnp.ones((DIM,), jnp.float32)
    p["pe_be"] = jnp.zeros((DIM,), jnp.float32)
    p["pe_w2"] = _xavier(ks[2], (DIM, DIM))
    p["pe_b2"] = jnp.zeros((DIM,), jnp.float32)
    # query_transformer (CrossTransformer) projections
    p["wq"] = _xavier(ks[3], (DIM, DIM))
    p["wk"] = _xavier(ks[4], (DIM, DIM))
    p["wv"] = _xavier(ks[5], (DIM, DIM))
    p["wo"] = _xavier(ks[6], (DIM, DIM))
    # update_rate: Linear(2*dim, 1)  (hybrid_gate=True); nn.Linear row layout (1, 2C)
    p["wu"] = _xavier(ks[7], (1, 2 * DIM))
    p["bu"] = jnp.zeros((), jnp.float32)
    # norm_out LayerNorm
    p["no_g"] = jnp.ones((DIM,), jnp.float32)
    p["no_b"] = jnp.zeros((DIM,), jnp.float32)
    return p


# --------------------------------------------------------------------------------------
# Forward (CenterPoint detector path)
# --------------------------------------------------------------------------------------
def forward(params, voxel_features, voxel_coords):
    # TODO(synk): QueryDeformableMambaLayer blocks (qssm/fusion/query_ffn/ffn/glssm) are
    # not defined in the provided source; block loop left as identity.
    # TODO(synk): spconv.SparseConv3d downZ_list / conv_out need sparse index-rule
    # generation (no clean Pallas equivalent); voxel set left unchanged.
    xyz = voxel_coords[:, 1:4].astype(jnp.float32)
    wmat, cpack = build_packs(params)
    # Single fused kernel: pos_embed + per-voxel cross attention (K/V batch-invariant,
    # so the per-batch PyTorch loop collapses into one pass over all rows) + gate + LN.
    feat_3d, pe = fused_forward(voxel_features, xyz, wmat, cpack)
    return {
        "pillar_features": feat_3d,
        "voxel_features": feat_3d,
        "voxel_coords": voxel_coords,
        "pos_embed": pe,
    }


if __name__ == "__main__":
    key = jax.random.PRNGKey(0)
    kf, kc, kp = jax.random.split(key, 3)

    N = BATCH * NV
    voxel_features = jax.random.normal(kf, (N, DIM), jnp.float32)
    # coords: (batch_idx, z, y, x); grouped per batch sample
    batch_idx = jnp.repeat(jnp.arange(BATCH, dtype=jnp.int32), NV)[:, None]
    zyx = jax.random.randint(kc, (N, 3), 0, 16, jnp.int32)
    voxel_coords = jnp.concatenate([batch_idx, zyx], axis=1)

    params = init_params(kp)

    out = jax.jit(forward)(params, voxel_features, voxel_coords)
    jax.block_until_ready(out)
    assert out["voxel_features"].shape == (N, DIM)
    assert out["pos_embed"].shape == (N, DIM)
    assert bool(jnp.all(jnp.isfinite(out["voxel_features"])))
    assert bool(jnp.all(jnp.isfinite(out["pos_embed"])))
    print("KERNEL_OK")
</pallas_src>

<mosaic_0001>
module attributes {stable_mosaic.version = 11 : i64} {
  func.func @fused_kernel(%arg0: i32, %arg1: memref<128x32xf32, #tpu.memory_space<vmem>>, %arg2: memref<128x3xf32, #tpu.memory_space<vmem>>, %arg3: memref<64x96xf32, #tpu.memory_space<vmem>>, %arg4: memref<56x64xf32, #tpu.memory_space<vmem>>, %arg5: memref<128x64xf32, #tpu.memory_space<vmem>>) attributes {dimension_semantics = [#tpu.dimension_semantics<parallel>], iteration_bounds = array<i64: 1>, scalar_prefetch = 0 : i64, scratch_operands = 0 : i64, tpu.core_type = #tpu.core_type<tc>, window_params = [{transform_indices = @transform_0, window_bounds = array<i64: 128, 32>}, {transform_indices = @transform_1, window_bounds = array<i64: 128, 3>}, {pipeline_mode = #tpu.pipeline_mode<synchronous>, transform_indices = @transform_2, window_bounds = array<i64: 64, 96>}, {pipeline_mode = #tpu.pipeline_mode<synchronous>, transform_indices = @transform_3, window_bounds = array<i64: 56, 64>}, {transform_indices = @transform_4, window_bounds = array<i64: 128, 64>}]} {
    %c0 = arith.constant 0 : index
    %c0_0 = arith.constant 0 : index
    %0 = vector.load %arg1[%c0, %c0_0] : memref<128x32xf32, #tpu.memory_space<vmem>>, vector<128x32xf32>
    %c0_1 = arith.constant 0 : index
    %c0_2 = arith.constant 0 : index
    %1 = vector.load %arg2[%c0_1, %c0_2] : memref<128x3xf32, #tpu.memory_space<vmem>>, vector<128x3xf32>
    %c0_3 = arith.constant 0 : index
    %c0_4 = arith.constant 0 : index
    %2 = vector.load %arg4[%c0_3, %c0_4] : memref<56x64xf32, #tpu.memory_space<vmem>>, vector<56x64xf32>
    %3 = vector.extract_strided_slice %2 {offsets = [0, 0], sizes = [1, 32], strides = [1, 1]} : vector<56x64xf32> to vector<1x32xf32>
    %4 = vector.extract_strided_slice %2 {offsets = [0, 32], sizes = [1, 32], strides = [1, 1]} : vector<56x64xf32> to vector<1x32xf32>
    %5 = vector.extract_strided_slice %2 {offsets = [1, 0], sizes = [1, 32], strides = [1, 1]} : vector<56x64xf32> to vector<1x32xf32>
    %6 = vector.extract_strided_slice %2 {offsets = [1, 32], sizes = [1, 32], strides = [1, 1]} : vector<56x64xf32> to vector<1x32xf32>
    %7 = vector.extract_strided_slice %2 {offsets = [2, 0], sizes = [1, 32], strides = [1, 1]} : vector<56x64xf32> to vector<1x32xf32>
    %8 = vector.extract_strided_slice %2 {offsets = [2, 32], sizes = [1, 32], strides = [1, 1]} : vector<56x64xf32> to vector<1x32xf32>
    %9 = vector.extract_strided_slice %2 {offsets = [3, 0], sizes = [1, 32], strides = [1, 1]} : vector<56x64xf32> to vector<1x32xf32>
    %10 = vector.extract_strided_slice %2 {offsets = [3, 32], sizes = [1, 32], strides = [1, 1]} : vector<56x64xf32> to vector<1x32xf32>
    %11 = vector.extract_strided_slice %2 {offsets = [4, 0], sizes = [1, 32], strides = [1, 1]} : vector<56x64xf32> to vector<1x32xf32>
    %12 = vector.extract_strided_slice %2 {offsets = [4, 32], sizes = [1, 1], strides = [1, 1]} : vector<56x64xf32> to vector<1x1xf32>
    %13 = vector.extract_strided_slice %2 {offsets = [8, 0], sizes = [32, 16], strides = [1, 1]} : vector<56x64xf32> to vector<32x16xf32>
    %14 = vector.extract_strided_slice %2 {offsets = [40, 0], sizes = [16, 64], strides = [1, 1]} : vector<56x64xf32> to vector<16x64xf32>
    %15 = vector.extract_strided_slice %1 {offsets = [0, 0], sizes = [128, 1], strides = [1, 1]} : vector<128x3xf32> to vector<128x1xf32>
    %16 = vector.broadcast %15 : vector<128x1xf32> to vector<128x32xf32>
    %17 = vector.broadcast %9 : vector<1x32xf32> to vector<128x32xf32>
    %18 = arith.mulf %16, %17 : vector<128x32xf32>
    %19 = vector.extract_strided_slice %1 {offsets = [0, 1], sizes = [128, 1], strides = [1, 1]} : vector<128x3xf32> to vector<128x1xf32>
    %20 = vector.broadcast %19 : vector<128x1xf32> to vector<128x32xf32>
    %21 = vector.broadcast %10 : vector<1x32xf32> to vector<128x32xf32>
    %22 = arith.mulf %20, %21 : vector<128x32xf32>
    %23 = arith.addf %18, %22 : vector<128x32xf32>
    %24 = vector.extract_strided_slice %1 {offsets = [0, 2], sizes = [128, 1], strides = [1, 1]} : vector<128x3xf32> to vector<128x1xf32>
    %25 = vector.broadcast %24 : vector<128x1xf32> to vector<128x32xf32>
    %26 = vector.broadcast %11 : vector<1x32xf32> to vector<128x32xf32>
    %27 = arith.mulf %25, %26 : vector<128x32xf32>
    %28 = arith.addf %23, %27 : vector<128x32xf32>
    %29 = vector.broadcast %3 : vector<1x32xf32> to vector<128x32xf32>
    %30 = arith.addf %28, %29 : vector<128x32xf32>
    %cst = arith.constant dense<0.000000e+00> : vector<128xf32>
    %31 = vector.multi_reduction <add>, %30, %cst [1] : vector<128x32xf32> to vector<128xf32>
    %32 = vector.shape_cast %31 : vector<128xf32> to vector<128x1xf32>
    %cst_5 = arith.constant 3.200000e+01 : f32
    %33 = vector.broadcast %cst_5 : f32 to vector<128x1xf32>
    %34 = arith.divf %32, %33 : vector<128x1xf32>
    %35 = vector.broadcast %34 : vector<128x1xf32> to vector<128x32xf32>
    %36 = arith.subf %30, %35 : vector<128x32xf32>
    %37 = arith.mulf %36, %36 : vector<128x32xf32>
    %cst_6 = arith.constant dense<0.000000e+00> : vector<128xf32>
    %38 = vector.multi_reduction <add>, %37, %cst_6 [1] : vector<128x32xf32> to vector<128xf32>
    %39 = vector.shape_cast %38 : vector<128xf32> to vector<128x1xf32>
    %cst_7 = arith.constant 3.200000e+01 : f32
    %40 = vector.broadcast %cst_7 : f32 to vector<128x1xf32>
    %41 = arith.divf %39, %40 : vector<128x1xf32>
    %42 = vector.broadcast %34 : vector<128x1xf32> to vector<128x32xf32>
    %43 = arith.subf %30, %42 : vector<128x32xf32>
    %cst_8 = arith.constant 9.99999974E-6 : f32
    %44 = vector.broadcast %cst_8 : f32 to vector<128x1xf32>
    %45 = arith.addf %41, %44 : vector<128x1xf32>
    %46 = math.rsqrt %45 : vector<128x1xf32>
    %47 = vector.broadcast %46 : vector<128x1xf32> to vector<128x32xf32>
    %48 = arith.mulf %43, %47 : vector<128x32xf32>
    %49 = vector.broadcast %4 : vector<1x32xf32> to vector<128x32xf32>
    %50 = arith.mulf %48, %49 : vector<128x32xf32>
    %51 = vector.broadcast %5 : vector<1x32xf32> to vector<128x32xf32>
    %52 = arith.addf %50, %51 : vector<128x32xf32>
    %cst_9 = arith.constant 0.000000e+00 : f32
    %53 = vector.broadcast %cst_9 : f32 to vector<128x32xf32>
    %54 = arith.maximumf %52, %53 : vector<128x32xf32>
    %55 = tpu.concatenate %54, %0 in 1 : vector<128x32xf32>, vector<128x32xf32> -> vector<128x64xf32>
    %c0_10 = arith.constant 0 : index
    %c0_11 = arith.constant 0 : index
    %56 = vector.load %arg3[%c0_10, %c0_11] : memref<64x96xf32, #tpu.memory_space<vmem>>, vector<64x96xf32>
    %cst_12 = arith.constant dense<0.000000e+00> : vector<128x96xf32>
    %57 = tpu.matmul %55, %56, %cst_12 {dimension_numbers = #tpu.dot_dimension_numbers<[1], [0], [0], [1], [0, 0, 1, 1], [], []>} : vector<128x64xf32>, vector<64x96xf32>, vector<128x96xf32> -> vector<128x96xf32>
    %58 = vector.extract_strided_slice %57 {offsets = [0, 0], sizes = [128, 32], strides = [1, 1]} : vector<128x96xf32> to vector<128x32xf32>
    %59 = vector.broadcast %6 : vector<1x32xf32> to vector<128x32xf32>
    %60 = arith.addf %58, %59 : vector<128x32xf32>
    %61 = vector.extract_strided_slice %57 {offsets = [0, 32], sizes = [128, 32], strides = [1, 1]} : vector<128x96xf32> to vector<128x32xf32>
    %62 = vector.extract_strided_slice %57 {offsets = [0, 64], sizes = [128, 1], strides = [1, 1]} : vector<128x96xf32> to vector<128x1xf32>
    %cst_13 = arith.constant dense<0.000000e+00> : vector<128x16xf32>
    %63 = tpu.matmul %61, %13, %cst_13 {dimension_numbers = #tpu.dot_dimension_numbers<[1], [0], [0], [1], [0, 0, 1, 1], [], []>} : vector<128x32xf32>, vector<32x16xf32>, vector<128x16xf32> -> vector<128x16xf32>
    %cst_14 = arith.constant dense<0xFF800000> : vector<128xf32>
    %64 = vector.multi_reduction <maximumf>, %63, %cst_14 [1] : vector<128x16xf32> to vector<128xf32>
    %65 = vector.shape_cast %64 : vector<128xf32> to vector<128x1xf32>
    %66 = vector.broadcast %65 : vector<128x1xf32> to vector<128x16xf32>
    %67 = arith.subf %63, %66 : vector<128x16xf32>
    %68 = math.exp %67 : vector<128x16xf32>
    %cst_15 = arith.constant dense<0.000000e+00> : vector<128xf32>
    %69 = vector.multi_reduction <add>, %68, %cst_15 [1] : vector<128x16xf32> to vector<128xf32>
    %70 = vector.shape_cast %69 : vector<128xf32> to vector<128x1xf32>
    %71 = tpu.reciprocal %70 : vector<128x1xf32> -> vector<128x1xf32>
    %72 = vector.broadcast %71 : vector<128x1xf32> to vector<128x16xf32>
    %73 = arith.mulf %68, %72 : vector<128x16xf32>
    %cst_16 = arith.constant dense<0.000000e+00> : vector<128x64xf32>
    %74 = tpu.matmul %73, %14, %cst_16 {dimension_numbers = #tpu.dot_dimension_numbers<[1], [0], [0], [1], [0, 0, 1, 1], [], []>} : vector<128x16xf32>, vector<16x64xf32>, vector<128x64xf32> -> vector<128x64xf32>
    %75 = vector.extract_strided_slice %74 {offsets = [0, 0], sizes = [128, 32], strides = [1, 1]} : vector<128x64xf32> to vector<128x32xf32>
    %76 = vector.extract_strided_slice %74 {offsets = [0, 32], sizes = [128, 1], strides = [1, 1]} : vector<128x64xf32> to vector<128x1xf32>
    %77 = arith.addf %62, %76 : vector<128x1xf32>
    %78 = vector.broadcast %12 : vector<1x1xf32> to vector<128x1xf32>
    %79 = arith.addf %77, %78 : vector<128x1xf32>
    %80 = arith.negf %79 : vector<128x1xf32>
    %81 = math.exp %80 : vector<128x1xf32>
    %cst_17 = arith.constant 1.000000e+00 : f32
    %82 = vector.broadcast %cst_17 : f32 to vector<128x1xf32>
    %83 = arith.addf %82, %81 : vector<128x1xf32>
    %84 = arith.divf %82, %83 : vector<128x1xf32>
    %85 = vector.broadcast %84 : vector<128x1xf32> to vector<128x32xf32>
    %86 = arith.mulf %85, %75 : vector<128x32xf32>
    %cst_18 = arith.constant 1.000000e+00 : f32
    %87 = vector.broadcast %cst_18 : f32 to vector<128x1xf32>
    %88 = arith.subf %87, %84 : vector<128x1xf32>
    %89 = vector.broadcast %88 : vector<128x1xf32> to vector<128x32xf32>
    %90 = arith.mulf %89, %0 : vector<128x32xf32>
    %91 = arith.addf %86, %90 : vector<128x32xf32>
    %cst_19 = arith.constant dense<0.000000e+00> : vector<128xf32>
    %92 = vector.multi_reduction <add>, %91, %cst_19 [1] : vector<128x32xf32> to vector<128xf32>
    %93 = vector.shape_cast %92 : vector<128xf32> to vector<128x1xf32>
    %cst_20 = arith.constant 3.200000e+01 : f32
    %94 = vector.broadcast %cst_20 : f32 to vector<128x1xf32>
    %95 = arith.divf %93, %94 : vector<128x1xf32>
    %96 = vector.broadcast %95 : vector<128x1xf32> to vector<128x32xf32>
    %97 = arith.subf %91, %96 : vector<128x32xf32>
    %98 = arith.mulf %97, %97 : vector<128x32xf32>
    %cst_21 = arith.constant dense<0.000000e+00> : vector<128xf32>
    %99 = vector.multi_reduction <add>, %98, %cst_21 [1] : vector<128x32xf32> to vector<128xf32>
    %100 = vector.shape_cast %99 : vector<128xf32> to vector<128x1xf32>
    %cst_22 = arith.constant 3.200000e+01 : f32
    %101 = vector.broadcast %cst_22 : f32 to vector<128x1xf32>
    %102 = arith.divf %100, %101 : vector<128x1xf32>
    %103 = vector.broadcast %95 : vector<128x1xf32> to vector<128x32xf32>
    %104 = arith.subf %91, %103 : vector<128x32xf32>
    %cst_23 = arith.constant 9.99999974E-6 : f32
    %105 = vector.broadcast %cst_23 : f32 to vector<128x1xf32>
    %106 = arith.addf %102, %105 : vector<128x1xf32>
    %107 = math.rsqrt %106 : vector<128x1xf32>
    %108 = vector.broadcast %107 : vector<128x1xf32> to vector<128x32xf32>
    %109 = arith.mulf %104, %108 : vector<128x32xf32>
    %110 = vector.broadcast %7 : vector<1x32xf32> to vector<128x32xf32>
    %111 = arith.mulf %109, %110 : vector<128x32xf32>
    %112 = vector.broadcast %8 : vector<1x32xf32> to vector<128x32xf32>
    %113 = arith.addf %111, %112 : vector<128x32xf32>
    %114 = tpu.concatenate %113, %60 in 1 : vector<128x32xf32>, vector<128x32xf32> -> vector<128x64xf32>
    %c0_24 = arith.constant 0 : index
    %c0_25 = arith.constant 0 : index
    %115 = vector.load %arg5[%c0_24, %c0_25] : memref<128x64xf32, #tpu.memory_space<vmem>>, vector<128x64xf32>
    tpu.vector_store %arg5[%c0_24, %c0_25], %114 {strides = array<i32>} : memref<128x64xf32, #tpu.memory_space<vmem>>, vector<128x64xf32>,
    return
  }
  func.func @transform_0(%arg0: i32) -> (i32, i32) {
    %c0_i32 = arith.constant 0 : i32
    %c0_i32_0 = arith.constant 0 : i32
    return %arg0, %c0_i32 : i32, i32
  }
  func.func @transform_1(%arg0: i32) -> (i32, i32) {
    %c0_i32 = arith.constant 0 : i32
    %c0_i32_0 = arith.constant 0 : i32
    return %arg0, %c0_i32 : i32, i32
  }
  func.func @transform_2(%arg0: i32) -> (i32, i32) {
    %c0_i32 = arith.constant 0 : i32
    %c0_i32_0 = arith.constant 0 : i32
    %c0_i32_1 = arith.constant 0 : i32
    return %c0_i32, %c0_i32_0 : i32, i32
  }
  func.func @transform_3(%arg0: i32) -> (i32, i32) {
    %c0_i32 = arith.constant 0 : i32
    %c0_i32_0 = arith.constant 0 : i32
    %c0_i32_1 = arith.constant 0 : i32
    return %c0_i32, %c0_i32_0 : i32, i32
  }
  func.func @transform_4(%arg0: i32) -> (i32, i32) {
    %c0_i32 = arith.constant 0 : i32
    %c0_i32_0 = arith.constant 0 : i32
    return %arg0, %c0_i32 : i32, i32
  }
}

</mosaic_0001>

<llo_original>
// kernel: forward.1
$region0: #{forward.1}
  #allocation0 [shape = 'u32[]', space=smem, size = 0x4, offset = 0x4, fixed_abs, tag = 'smem constant byte address 0x4 - core index']
  #allocation1 [shape = 'u32[144,128]{1,0:T(1,128)}', space=vmem, size = 0x12000, scoped, tag = 'internal scratch']
  %s0 = inlined_call_operand.vmem [shape: f32[128,32], index: 0, kind: input, shape index: {}]
  %s1 = inlined_call_operand.vmem [shape: f32[128,3], index: 1, kind: input, shape index: {}]
  %s2 = inlined_call_operand.vmem [shape: f32[64,96], index: 2, kind: input, shape index: {}]
  %s3 = inlined_call_operand.vmem [shape: f32[56,64], index: 3, kind: input, shape index: {}]
  %s4 = inlined_call_operand.vmem [shape: f32[128,64], index: 4, kind: output, shape index: {}]
  %s5 = sld [smem:[#allocation0]]
  $region26: #{forward.1} parent=0
    _
  %s7 = ssub.s32 1, %s5
  %s8 = scalar_select 0, %s7, %s5
  // Predicated region
  $region2: #{forward.1} parent=0 // pred_check
    _
  $region3: #{forward.1} parent=0 // pred_check_branch
    %10 = sbr.rel (0) target = $region5
  $region4: #{forward.1} parent=0 // pred_region
    _
  $region5: #{forward.1} parent=0 // pred_fallthru
    _
  // Predicated region
  $region6: #{forward.1} parent=0 // pred_check
    _
  $region7: #{forward.1} parent=0 // pred_check_branch
    %12 = sbr.rel (0) target = $region9
  $region8: #{forward.1} parent=0 // pred_region
    _
  $region9: #{forward.1} parent=0 // pred_fallthru
    _
  // Predicated region
  $region10: #{forward.1} parent=0 // pred_check
    _
  $region11: #{forward.1} parent=0 // pred_check_branch
    %14 = sbr.rel (0) target = $region13
  $region12: #{forward.1} parent=0 // pred_region
    _
  $region13: #{forward.1} parent=0 // pred_fallthru
    _
  // Predicated region
  $region14: #{forward.1} parent=0 // pred_check
    _
  $region15: #{forward.1} parent=0 // pred_check_branch
    %16 = sbr.rel (0) target = $region17
  $region16: #{forward.1} parent=0 // pred_region
    _
  $region17: #{forward.1} parent=0 // pred_fallthru
    _
  %v17 = vld [vmem:[%s0] sm:$0xff]
  %v18 = vld [vmem:[%s0 + $0x8] sm:$0xff]
  %v19 = vld [vmem:[%s0 + $0x10] sm:$0xff]
  %v20 = vld [vmem:[%s0 + $0x18] sm:$0xff]
  %v21 = vld [vmem:[%s0 + $0x20] sm:$0xff]
  %v22 = vld [vmem:[%s0 + $0x28] sm:$0xff]
  %v23 = vld [vmem:[%s0 + $0x30] sm:$0xff]
  %v24 = vld [vmem:[%s0 + $0x38] sm:$0xff]
  %v25 = vld [vmem:[%s0 + $0x40] sm:$0xff]
  %v26 = vld [vmem:[%s0 + $0x48] sm:$0xff]
  %v27 = vld [vmem:[%s0 + $0x50] sm:$0xff]
  %v28 = vld [vmem:[%s0 + $0x58] sm:$0xff]
  %v29 = vld [vmem:[%s0 + $0x60] sm:$0xff]
  %v30 = vld [vmem:[%s0 + $0x68] sm:$0xff]
  %v31 = vld [vmem:[%s0 + $0x70] sm:$0xff]
  %v32 = vld [vmem:[%s0 + $0x78] sm:$0xff]
  %v33 = vld [vmem:[%s1] sm:$0xff]
  %v34 = vld [vmem:[%s1 + $0x8] sm:$0xff]
  %v35 = vld [vmem:[%s1 + $0x10] sm:$0xff]
  %v36 = vld [vmem:[%s1 + $0x18] sm:$0xff]
  %v37 = vld [vmem:[%s1 + $0x20] sm:$0xff]
  %v38 = vld [vmem:[%s1 + $0x28] sm:$0xff]
  %v39 = vld [vmem:[%s1 + $0x30] sm:$0xff]
  %v40 = vld [vmem:[%s1 + $0x38] sm:$0xff]
  %v41 = vld [vmem:[%s1 + $0x40] sm:$0xff]
  %v42 = vld [vmem:[%s1 + $0x48] sm:$0xff]
  %v43 = vld [vmem:[%s1 + $0x50] sm:$0xff]
  %v44 = vld [vmem:[%s1 + $0x58] sm:$0xff]
  %v45 = vld [vmem:[%s1 + $0x60] sm:$0xff]
  %v46 = vld [vmem:[%s1 + $0x68] sm:$0xff]
  %v47 = vld [vmem:[%s1 + $0x70] sm:$0xff]
  %v48 = vld [vmem:[%s1 + $0x78] sm:$0xff]
  %v49 = vld [vmem:[%s3] sm:$0xff]
  %v50 = vld [vmem:[%s3 + $0x8] sm:$0xff]
  %v51 = vld [vmem:[%s3 + $0x10] sm:$0xff]
  %v52 = vld [vmem:[%s3 + $0x18] sm:$0xff]
  %v53 = vld [vmem:[%s3 + $0x20] sm:$0xff]
  %v54 = vld [vmem:[%s3 + $0x28] sm:$0xff]
  %v55 = vld [vmem:[%s3 + $0x30] sm:$0xff]
  %57 = vset.pattern.permute.xlu0 0
  %58 = vperm.xlu0 %57, %v33
  %v59 = vpop.permute.xlu0 %58
  %62 = vset.pattern.permute.xlu0 0
  %63 = vperm.xlu0 %62, %v34
  %v64 = vpop.permute.xlu0 %63
  %67 = vset.pattern.permute.xlu0 0
  %68 = vperm.xlu0 %67, %v35
  %v69 = vpop.permute.xlu0 %68
  %72 = vset.pattern.permute.xlu0 0
  %73 = vperm.xlu0 %72, %v36
  %v74 = vpop.permute.xlu0 %73
  %77 = vset.pattern.permute.xlu0 0
  %78 = vperm.xlu0 %77, %v37
  %v79 = vpop.permute.xlu0 %78
  %82 = vset.pattern.permute.xlu0 0
  %83 = vperm.xlu0 %82, %v38
  %v84 = vpop.permute.xlu0 %83
  %87 = vset.pattern.permute.xlu0 0
  %88 = vperm.xlu0 %87, %v39
  %v89 = vpop.permute.xlu0 %88
  %92 = vset.pattern.permute.xlu0 0
  %93 = vperm.xlu0 %92, %v40
  %v94 = vpop.permute.xlu0 %93
  %97 = vset.pattern.permute.xlu0 0
  %98 = vperm.xlu0 %97, %v41
  %v99 = vpop.permute.xlu0 %98
  %102 = vset.pattern.permute.xlu0 0
  %103 = vperm.xlu0 %102, %v42
  %v104 = vpop.permute.xlu0 %103
  %107 = vset.pattern.permute.xlu0 0
  %108 = vperm.xlu0 %107, %v43
  %v109 = vpop.permute.xlu0 %108
  %112 = vset.pattern.permute.xlu0 0
  %113 = vperm.xlu0 %112, %v44
  %v114 = vpop.permute.xlu0 %113
  %117 = vset.pattern.permute.xlu0 0
  %118 = vperm.xlu0 %117, %v45
  %v119 = vpop.permute.xlu0 %118
  %122 = vset.pattern.permute.xlu0 0
  %123 = vperm.xlu0 %122, %v46
  %v124 = vpop.permute.xlu0 %123
  %127 = vset.pattern.permute.xlu0 0
  %128 = vperm.xlu0 %127, %v47
  %v129 = vpop.permute.xlu0 %128
  %132 = vset.pattern.permute.xlu0 0
  %133 = vperm.xlu0 %132, %v48
  %v134 = vpop.permute.xlu0 %133
  %v136 = vlaneseq
  %v137 = vshrl.u32 %v136, 7
  %v138 = vsub.s32 3, %v137
  %v139 = vrot.slane %v49, %v138
  %v140 = vmul.f32 %v59, %v139
  %v141 = vmul.f32 %v64, %v139
  %v142 = vmul.f32 %v69, %v139
  %v143 = vmul.f32 %v74, %v139
  %v144 = vmul.f32 %v79, %v139
  %v145 = vmul.f32 %v84, %v139
  %v146 = vmul.f32 %v89, %v139
  %v147 = vmul.f32 %v94, %v139
  %v148 = vmul.f32 %v99, %v139
  %v149 = vmul.f32 %v104, %v139
  %v150 = vmul.f32 %v109, %v139
  %v151 = vmul.f32 %v114, %v139
  %v152 = vmul.f32 %v119, %v139
  %v153 = vmul.f32 %v124, %v139
  %v154 = vmul.f32 %v129, %v139
  %v155 = vmul.f32 %v134, %v139
  %156 = vset.pattern.permute.xlu0 1
  %157 = vperm.xlu0 %156, %v33
  %v158 = vpop.permute.xlu0 %157
  %160 = vset.pattern.permute.xlu0 1
  %161 = vperm.xlu0 %160, %v34
  %v162 = vpop.permute.xlu0 %161
  %164 = vset.pattern.permute.xlu0 1
  %165 = vperm.xlu0 %164, %v35
  %v166 = vpop.permute.xlu0 %165
  %168 = vset.pattern.permute.xlu0 1
  %169 = vperm.xlu0 %168, %v36
  %v170 = vpop.permute.xlu0 %169
  %172 = vset.pattern.permute.xlu0 1
  %173 = vperm.xlu0 %172, %v37
  %v174 = vpop.permute.xlu0 %173
  %176 = vset.pattern.permute.xlu0 1
  %177 = vperm.xlu0 %176, %v38
  %v178 = vpop.permute.xlu0 %177
  %180 = vset.pattern.permute.xlu0 1
  %181 = vperm.xlu0 %180, %v39
  %v182 = vpop.permute.xlu0 %181
  %184 = vset.pattern.permute.xlu0 1
  %185 = vperm.xlu0 %184, %v40
  %v186 = vpop.permute.xlu0 %185
  %188 = vset.pattern.permute.xlu0 1
  %189 = vperm.xlu0 %188, %v41
  %v190 = vpop.permute.xlu0 %189
  %192 = vset.pattern.permute.xlu0 1
  %193 = vperm.xlu0 %192, %v42
  %v194 = vpop.permute.xlu0 %193
  %196 = vset.pattern.permute.xlu0 1
  %197 = vperm.xlu0 %196, %v43
  %v198 = vpop.permute.xlu0 %197
  %200 = vset.pattern.permute.xlu0 1
  %201 = vperm.xlu0 %200, %v44
  %v202 = vpop.permute.xlu0 %201
  %204 = vset.pattern.permute.xlu0 1
  %205 = vperm.xlu0 %204, %v45
  %v206 = vpop.permute.xlu0 %205
  %208 = vset.pattern.permute.xlu0 1
  %209 = vperm.xlu0 %208, %v46
  %v210 = vpop.permute.xlu0 %209
  %212 = vset.pattern.permute.xlu0 1
  %213 = vperm.xlu0 %212, %v47
  %v214 = vpop.permute.xlu0 %213
  %216 = vset.pattern.permute.xlu0 1
  %217 = vperm.xlu0 %216, %v48
  %v218 = vpop.permute.xlu0 %217
  %v220 = vmul.f32 %v158, %v139
  %v221 = vmul.f32 %v162, %v139
  %v222 = vmul.f32 %v166, %v139
  %v223 = vmul.f32 %v170, %v139
  %v224 = vmul.f32 %v174, %v139
  %v225 = vmul.f32 %v178, %v139
  %v226 = vmul.f32 %v182, %v139
  %v227 = vmul.f32 %v186, %v139
  %v228 = vmul.f32 %v190, %v139
  %v229 = vmul.f32 %v194, %v139
  %v230 = vmul.f32 %v198, %v139
  %v231 = vmul.f32 %v202, %v139
  %v232 = vmul.f32 %v206, %v139
  %v233 = vmul.f32 %v210, %v139
  %v234 = vmul.f32 %v214, %v139
  %v235 = vmul.f32 %v218, %v139
  %252 = vrot.lane.b32.xlu0 %v220, 96
  %v253 = vpop.permute.xlu0 %252
  %254 = vrot.lane.b32.xlu0 %v221, 96
  %v255 = vpop.permute.xlu0 %254
  %256 = vrot.lane.b32.xlu0 %v222, 96
  %v257 = vpop.permute.xlu0 %256
  %258 = vrot.lane.b32.xlu0 %v223, 96
  %v259 = vpop.permute.xlu0 %258
  %260 = vrot.lane.b32.xlu0 %v224, 96
  %v261 = vpop.permute.xlu0 %260
  %262 = vrot.lane.b32.xlu0 %v225, 96
  %v263 = vpop.permute.xlu0 %262
  %264 = vrot.lane.b32.xlu0 %v226, 96
  %v265 = vpop.permute.xlu0 %264
  %266 = vrot.lane.b32.xlu0 %v227, 96
  %v267 = vpop.permute.xlu0 %266
  %268 = vrot.lane.b32.xlu0 %v228, 96
  %v269 = vpop.permute.xlu0 %268
  %270 = vrot.lane.b32.xlu0 %v229, 96
  %v271 = vpop.permute.xlu0 %270
  %272 = vrot.lane.b32.xlu0 %v230, 96
  %v273 = vpop.permute.xlu0 %272
  %274 = vrot.lane.b32.xlu0 %v231, 96
  %v275 = vpop.permute.xlu0 %274
  %276 = vrot.lane.b32.xlu0 %v232, 96
  %v277 = vpop.permute.xlu0 %276
  %278 = vrot.lane.b32.xlu0 %v233, 96
  %v279 = vpop.permute.xlu0 %278
  %280 = vrot.lane.b32.xlu0 %v234, 96
  %v281 = vpop.permute.xlu0 %280
  %282 = vrot.lane.b32.xlu0 %v235, 96
  %v283 = vpop.permute.xlu0 %282
  %v300 = vadd.f32 %v140, %v253
  %v301 = vadd.f32 %v141, %v255
  %v302 = vadd.f32 %v142, %v257
  %v303 = vadd.f32 %v143, %v259
  %v304 = vadd.f32 %v144, %v261
  %v305 = vadd.f32 %v145, %v263
  %v306 = vadd.f32 %v146, %v265
  %v307 = vadd.f32 %v147, %v267
  %v308 = vadd.f32 %v148, %v269
  %v309 = vadd.f32 %v149, %v271
  %v310 = vadd.f32 %v150, %v273
  %v311 = vadd.f32 %v151, %v275
  %v312 = vadd.f32 %v152, %v277
  %v313 = vadd.f32 %v153, %v279
  %v314 = vadd.f32 %v154, %v281
  %v315 = vadd.f32 %v155, %v283
  %316 = vset.pattern.permute.xlu0 2
  %317 = vperm.xlu0 %316, %v33
  %v318 = vpop.permute.xlu0 %317
  %320 = vset.pattern.permute.xlu0 2
  %321 = vperm.xlu0 %320, %v34
  %v322 = vpop.permute.xlu0 %321
  %324 = vset.pattern.permute.xlu0 2
  %325 = vperm.xlu0 %324, %v35
  %v326 = vpop.permute.xlu0 %325
  %328 = vset.pattern.permute.xlu0 2
  %329 = vperm.xlu0 %328, %v36
  %v330 = vpop.permute.xlu0 %329
  %332 = vset.pattern.permute.xlu0 2
  %333 = vperm.xlu0 %332, %v37
  %v334 = vpop.permute.xlu0 %333
  %336 = vset.pattern.permute.xlu0 2
  %337 = vperm.xlu0 %336, %v38
  %v338 = vpop.permute.xlu0 %337
  %340 = vset.pattern.permute.xlu0 2
  %341 = vperm.xlu0 %340, %v39
  %v342 = vpop.permute.xlu0 %341
  %344 = vset.pattern.permute.xlu0 2
  %345 = vperm.xlu0 %344, %v40
  %v346 = vpop.permute.xlu0 %345
  %348 = vset.pattern.permute.xlu0 2
  %349 = vperm.xlu0 %348, %v41
  %v350 = vpop.permute.xlu0 %349
  %352 = vset.pattern.permute.xlu0 2
  %353 = vperm.xlu0 %352, %v42
  %v354 = vpop.permute.xlu0 %353
  %356 = vset.pattern.permute.xlu0 2
  %357 = vperm.xlu0 %356, %v43
  %v358 = vpop.permute.xlu0 %357
  %360 = vset.pattern.permute.xlu0 2
  %361 = vperm.xlu0 %360, %v44
  %v362 = vpop.permute.xlu0 %361
  %364 = vset.pattern.permute.xlu0 2
  %365 = vperm.xlu0 %364, %v45
  %v366 = vpop.permute.xlu0 %365
  %368 = vset.pattern.permute.xlu0 2
  %369 = vperm.xlu0 %368, %v46
  %v370 = vpop.permute.xlu0 %369
  %372 = vset.pattern.permute.xlu0 2
  %373 = vperm.xlu0 %372, %v47
  %v374 = vpop.permute.xlu0 %373
  %376 = vset.pattern.permute.xlu0 2
  %377 = vperm.xlu0 %376, %v48
  %v378 = vpop.permute.xlu0 %377
  %v380 = vlaneseq
  %v381 = vshrl.u32 %v380, 7
  %v382 = vsub.s32 4, %v381
  %v383 = vrot.slane %v49, %v382
  %v384 = vmul.f32 %v318, %v383
  %v385 = vmul.f32 %v322, %v383
  %v386 = vmul.f32 %v326, %v383
  %v387 = vmul.f32 %v330, %v383
  %v388 = vmul.f32 %v334, %v383
  %v389 = vmul.f32 %v338, %v383
  %v390 = vmul.f32 %v342, %v383
  %v391 = vmul.f32 %v346, %v383
  %v392 = vmul.f32 %v350, %v383
  %v393 = vmul.f32 %v354, %v383
  %v394 = vmul.f32 %v358, %v383
  %v395 = vmul.f32 %v362, %v383
  %v396 = vmul.f32 %v366, %v383
  %v397 = vmul.f32 %v370, %v383
  %v398 = vmul.f32 %v374, %v383
  %v399 = vmul.f32 %v378, %v383
  %v400 = vadd.f32 %v300, %v384
  %v401 = vadd.f32 %v301, %v385
  %v402 = vadd.f32 %v302, %v386
  %v403 = vadd.f32 %v303, %v387
  %v404 = vadd.f32 %v304, %v388
  %v405 = vadd.f32 %v305, %v389
  %v406 = vadd.f32 %v306, %v390
  %v407 = vadd.f32 %v307, %v391
  %v408 = vadd.f32 %v308, %v392
  %v409 = vadd.f32 %v309, %v393
  %v410 = vadd.f32 %v310, %v394
  %v411 = vadd.f32 %v311, %v395
  %v412 = vadd.f32 %v312, %v396
  %v413 = vadd.f32 %v313, %v397
  %v414 = vadd.f32 %v314, %v398
  %v415 = vadd.f32 %v315, %v399
  %v416 = vlaneseq
  %v417 = vshrl.u32 %v416, 7
  %v418 = vsub.s32 0, %v417
  %v419 = vrot.slane %v49, %v418
  %v420 = vadd.f32 %v400, %v419
  %v421 = vadd.f32 %v401, %v419
  %v422 = vadd.f32 %v402, %v419
  %v423 = vadd.f32 %v403, %v419
  %v424 = vadd.f32 %v404, %v419
  %v425 = vadd.f32 %v405, %v419
  %v426 = vadd.f32 %v406, %v419
  %v427 = vadd.f32 %v407, %v419
  %v428 = vadd.f32 %v408, %v419
  %v429 = vadd.f32 %v409, %v419
  %v430 = vadd.f32 %v410, %v419
  %v431 = vadd.f32 %v411, %v419
  %v432 = vadd.f32 %v412, %v419
  %v433 = vadd.f32 %v413, %v419
  %v434 = vadd.f32 %v414, %v419
  %v435 = vadd.f32 %v415, %v419
  %vm436 = vcmask 261120
  %v437 = vsel %vm436, %v420, 0.0
  %438 = vadd.xlane.f32.xlu0 %v437
  %v439 = vpop.xlane.xlu0 %438
  %v440 = vsel %vm436, %v421, 0.0
  %441 = vadd.xlane.f32.xlu0 %v440
  %v442 = vpop.xlane.xlu0 %441
  %v443 = vsel %vm436, %v422, 0.0
  %444 = vadd.xlane.f32.xlu0 %v443
  %v445 = vpop.xlane.xlu0 %444
  %v446 = vsel %vm436, %v423, 0.0
  %447 = vadd.xlane.f32.xlu0 %v446
  %v448 = vpop.xlane.xlu0 %447
  %v449 = vsel %vm436, %v424, 0.0
  %450 = vadd.xlane.f32.xlu0 %v449
  %v451 = vpop.xlane.xlu0 %450
  %v452 = vsel %vm436, %v425, 0.0
  %453 = vadd.xlane.f32.xlu0 %v452
  %v454 = vpop.xlane.xlu0 %453
  %v455 = vsel %vm436, %v426, 0.0
  %456 = vadd.xlane.f32.xlu0 %v455
  %v457 = vpop.xlane.xlu0 %456
  %v458 = vsel %vm436, %v427, 0.0
  %459 = vadd.xlane.f32.xlu0 %v458
  %v460 = vpop.xlane.xlu0 %459
  %v461 = vsel %vm436, %v428, 0.0
  %462 = vadd.xlane.f32.xlu0 %v461
  %v463 = vpop.xlane.xlu0 %462
  %v464 = vsel %vm436, %v429, 0.0
  %465 = vadd.xlane.f32.xlu0 %v464
  %v466 = vpop.xlane.xlu0 %465
  %v467 = vsel %vm436, %v430, 0.0
  %468 = vadd.xlane.f32.xlu0 %v467
  %v469 = vpop.xlane.xlu0 %468
  %v470 = vsel %vm436, %v431, 0.0
  %471 = vadd.xlane.f32.xlu0 %v470
  %v472 = vpop.xlane.xlu0 %471
  %v473 = vsel %vm436, %v432, 0.0
  %474 = vadd.xlane.f32.xlu0 %v473
  %v475 = vpop.xlane.xlu0 %474
  %v476 = vsel %vm436, %v433, 0.0
  %477 = vadd.xlane.f32.xlu0 %v476
  %v478 = vpop.xlane.xlu0 %477
  %v479 = vsel %vm436, %v434, 0.0
  %480 = vadd.xlane.f32.xlu0 %v479
  %v481 = vpop.xlane.xlu0 %480
  %v482 = vsel %vm436, %v435, 0.0
  %483 = vadd.xlane.f32.xlu0 %v482
  %v484 = vpop.xlane.xlu0 %483
  %v485 = vrcp.pop 32.0
  %v486 = vmul.f32 %v439, %v485
  %v487 = vmul.f32 %v442, %v485
  %v488 = vmul.f32 %v445, %v485
  %v489 = vmul.f32 %v448, %v485
  %v490 = vmul.f32 %v451, %v485
  %v491 = vmul.f32 %v454, %v485
  %v492 = vmul.f32 %v457, %v485
  %v493 = vmul.f32 %v460, %v485
  %v494 = vmul.f32 %v463, %v485
  %v495 = vmul.f32 %v466, %v485
  %v496 = vmul.f32 %v469, %v485
  %v497 = vmul.f32 %v472, %v485
  %v498 = vmul.f32 %v475, %v485
  %v499 = vmul.f32 %v478, %v485
  %v500 = vmul.f32 %v481, %v485
  %v501 = vmul.f32 %v484, %v485
  %v502 = vsub.f32 %v420, %v486
  %v503 = vsub.f32 %v421, %v487
  %v504 = vsub.f32 %v422, %v488
  %v505 = vsub.f32 %v423, %v489
  %v506 = vsub.f32 %v424, %v490
  %v507 = vsub.f32 %v425, %v491
  %v508 = vsub.f32 %v426, %v492
  %v509 = vsub.f32 %v427, %v493
  %v510 = vsub.f32 %v428, %v494
  %v511 = vsub.f32 %v429, %v495
  %v512 = vsub.f32 %v430, %v496
  %v513 = vsub.f32 %v431, %v497
  %v514 = vsub.f32 %v432, %v498
  %v515 = vsub.f32 %v433, %v499
  %v516 = vsub.f32 %v434, %v500
  %v517 = vsub.f32 %v435, %v501
  %v518 = vmul.f32 %v502, %v502
  %v519 = vmul.f32 %v503, %v503
  %v520 = vmul.f32 %v504, %v504
  %v521 = vmul.f32 %v505, %v505
  %v522 = vmul.f32 %v506, %v506
  %v523 = vmul.f32 %v507, %v507
  %v524 = vmul.f32 %v508, %v508
  %v525 = vmul.f32 %v509, %v509
  %v526 = vmul.f32 %v510, %v510
  %v527 = vmul.f32 %v511, %v511
  %v528 = vmul.f32 %v512, %v512
  %v529 = vmul.f32 %v513, %v513
  %v530 = vmul.f32 %v514, %v514
  %v531 = vmul.f32 %v515, %v515
  %v532 = vmul.f32 %v516, %v516
  %v533 = vmul.f32 %v517, %v517
  %v534 = vsel %vm436, %v518, 0.0
  %535 = vadd.xlane.f32.xlu0 %v534
  %v536 = vpop.xlane.xlu0 %535
  %v537 = vsel %vm436, %v519, 0.0
  %538 = vadd.xlane.f32.xlu0 %v537
  %v539 = vpop.xlane.xlu0 %538
  %v540 = vsel %vm436, %v520, 0.0
  %541 = vadd.xlane.f32.xlu0 %v540
  %v542 = vpop.xlane.xlu0 %541
  %v543 = vsel %vm436, %v521, 0.0
  %544 = vadd.xlane.f32.xlu0 %v543
  %v545 = vpop.xlane.xlu0 %544
  %v546 = vsel %vm436, %v522, 0.0
  %547 = vadd.xlane.f32.xlu0 %v546
  %v548 = vpop.xlane.xlu0 %547
  %v549 = vsel %vm436, %v523, 0.0
  %550 = vadd.xlane.f32.xlu0 %v549
  %v551 = vpop.xlane.xlu0 %550
  %v552 = vsel %vm436, %v524, 0.0
  %553 = vadd.xlane.f32.xlu0 %v552
  %v554 = vpop.xlane.xlu0 %553
  %v555 = vsel %vm436, %v525, 0.0
  %556 = vadd.xlane.f32.xlu0 %v555
  %v557 = vpop.xlane.xlu0 %556
  %v558 = vsel %vm436, %v526, 0.0
  %559 = vadd.xlane.f32.xlu0 %v558
  %v560 = vpop.xlane.xlu0 %559
  %v561 = vsel %vm436, %v527, 0.0
  %562 = vadd.xlane.f32.xlu0 %v561
  %v563 = vpop.xlane.xlu0 %562
  %v564 = vsel %vm436, %v528, 0.0
  %565 = vadd.xlane.f32.xlu0 %v564
  %v566 = vpop.xlane.xlu0 %565
  %v567 = vsel %vm436, %v529, 0.0
  %568 = vadd.xlane.f32.xlu0 %v567
  %v569 = vpop.xlane.xlu0 %568
  %v570 = vsel %vm436, %v530, 0.0
  %571 = vadd.xlane.f32.xlu0 %v570
  %v572 = vpop.xlane.xlu0 %571
  %v573 = vsel %vm436, %v531, 0.0
  %574 = vadd.xlane.f32.xlu0 %v573
  %v575 = vpop.xlane.xlu0 %574
  %v576 = vsel %vm436, %v532, 0.0
  %577 = vadd.xlane.f32.xlu0 %v576
  %v578 = vpop.xlane.xlu0 %577
  %v579 = vsel %vm436, %v533, 0.0
  %580 = vadd.xlane.f32.xlu0 %v579
  %v581 = vpop.xlane.xlu0 %580
  %v582 = vmul.f32 %v536, %v485
  %v583 = vmul.f32 %v539, %v485
  %v584 = vmul.f32 %v542, %v485
  %v585 = vmul.f32 %v545, %v485
  %v586 = vmul.f32 %v548, %v485
  %v587 = vmul.f32 %v551, %v485
  %v588 = vmul.f32 %v554, %v485
  %v589 = vmul.f32 %v557, %v485
  %v590 = vmul.f32 %v560, %v485
  %v591 = vmul.f32 %v563, %v485
  %v592 = vmul.f32 %v566, %v485
  %v593 = vmul.f32 %v569, %v485
  %v594 = vmul.f32 %v572, %v485
  %v595 = vmul.f32 %v575, %v485
  %v596 = vmul.f32 %v578, %v485
  %v597 = vmul.f32 %v581, %v485
  %v598 = vadd.f32 %v582, 1e-05
  %v599 = vadd.f32 %v583, 1e-05
  %v600 = vadd.f32 %v584, 1e-05
  %v601 = vadd.f32 %v585, 1e-05
  %v602 = vadd.f32 %v586, 1e-05
  %v603 = vadd.f32 %v587, 1e-05
  %v604 = vadd.f32 %v588, 1e-05
  %v605 = vadd.f32 %v589, 1e-05
  %v606 = vadd.f32 %v590, 1e-05
  %v607 = vadd.f32 %v591, 1e-05
  %v608 = vadd.f32 %v592, 1e-05
  %v609 = vadd.f32 %v593, 1e-05
  %v610 = vadd.f32 %v594, 1e-05
  %v611 = vadd.f32 %v595, 1e-05
  %v612 = vadd.f32 %v596, 1e-05
  %v613 = vadd.f32 %v597, 1e-05
  %v614 = vrsqrt.pop %v598
  %v615 = vrsqrt.pop %v599
  %v616 = vrsqrt.pop %v600
  %v617 = vrsqrt.pop %v601
  %v618 = vrsqrt.pop %v602
  %v619 = vrsqrt.pop %v603
  %v620 = vrsqrt.pop %v604
  %v621 = vrsqrt.pop %v605
  %v622 = vrsqrt.pop %v606
  %v623 = vrsqrt.pop %v607
  %v624 = vrsqrt.pop %v608
  %v625 = vrsqrt.pop %v609
  %v626 = vrsqrt.pop %v610
  %v627 = vrsqrt.pop %v611
  %v628 = vrsqrt.pop %v612
  %v629 = vrsqrt.pop %v613
  %v630 = vmul.f32 %v502, %v614
  %v631 = vmul.f32 %v503, %v615
  %v632 = vmul.f32 %v504, %v616
  %v633 = vmul.f32 %v505, %v617
  %v634 = vmul.f32 %v506, %v618
  %v635 = vmul.f32 %v507, %v619
  %v636 = vmul.f32 %v508, %v620
  %v637 = vmul.f32 %v509, %v621
  %v638 = vmul.f32 %v510, %v622
  %v639 = vmul.f32 %v511, %v623
  %v640 = vmul.f32 %v512, %v624
  %v641 = vmul.f32 %v513, %v625
  %v642 = vmul.f32 %v514, %v626
  %v643 = vmul.f32 %v515, %v627
  %v644 = vmul.f32 %v516, %v628
  %v645 = vmul.f32 %v517, %v629
  %647 = vrot.lane.b32.xlu0 %v419, 96
  %v648 = vpop.permute.xlu0 %647
  %v650 = vmul.f32 %v630, %v648
  %v651 = vmul.f32 %v631, %v648
  %v652 = vmul.f32 %v632, %v648
  %v653 = vmul.f32 %v633, %v648
  %v654 = vmul.f32 %v634, %v648
  %v655 = vmul.f32 %v635, %v648
  %v656 = vmul.f32 %v636, %v648
  %v657 = vmul.f32 %v637, %v648
  %v658 = vmul.f32 %v638, %v648
  %v659 = vmul.f32 %v639, %v648
  %v660 = vmul.f32 %v640, %v648
  %v661 = vmul.f32 %v641, %v648
  %v662 = vmul.f32 %v642, %v648
  %v663 = vmul.f32 %v643, %v648
  %v664 = vmul.f32 %v644, %v648
  %v665 = vmul.f32 %v645, %v648
  %v666 = vlaneseq
  %v667 = vshrl.u32 %v666, 7
  %v668 = vsub.s32 1, %v667
  %v669 = vrot.slane %v49, %v668
  %v670 = vadd.f32 %v650, %v669
  %v671 = vadd.f32 %v651, %v669
  %v672 = vadd.f32 %v652, %v669
  %v673 = vadd.f32 %v653, %v669
  %v674 = vadd.f32 %v654, %v669
  %v675 = vadd.f32 %v655, %v669
  %v676 = vadd.f32 %v656, %v669
  %v677 = vadd.f32 %v657, %v669
  %v678 = vadd.f32 %v658, %v669
  %v679 = vadd.f32 %v659, %v669
  %v680 = vadd.f32 %v660, %v669
  %v681 = vadd.f32 %v661, %v669
  %v682 = vadd.f32 %v662, %v669
  %v683 = vadd.f32 %v663, %v669
  %v684 = vadd.f32 %v664, %v669
  %v685 = vadd.f32 %v665, %v669
  %v686 = vmax.f32 %v670, 0.0
  %v687 = vmax.f32 %v671, 0.0
  %v688 = vmax.f32 %v672, 0.0
  %v689 = vmax.f32 %v673, 0.0
  %v690 = vmax.f32 %v674, 0.0
  %v691 = vmax.f32 %v675, 0.0
  %v692 = vmax.f32 %v676, 0.0
  %v693 = vmax.f32 %v677, 0.0
  %v694 = vmax.f32 %v678, 0.0
  %v695 = vmax.f32 %v679, 0.0
  %v696 = vmax.f32 %v680, 0.0
  %v697 = vmax.f32 %v681, 0.0
  %v698 = vmax.f32 %v682, 0.0
  %v699 = vmax.f32 %v683, 0.0
  %v700 = vmax.f32 %v684, 0.0
  %v701 = vmax.f32 %v685, 0.0
  %718 = vrot.lane.b32.xlu0 %v17, 32
  %v719 = vpop.permute.xlu0 %718
  %720 = vrot.lane.b32.xlu0 %v18, 32
  %v721 = vpop.permute.xlu0 %720
  %722 = vrot.lane.b32.xlu0 %v19, 32
  %v723 = vpop.permute.xlu0 %722
  %724 = vrot.lane.b32.xlu0 %v20, 32
  %v725 = vpop.permute.xlu0 %724
  %726 = vrot.lane.b32.xlu0 %v21, 32
  %v727 = vpop.permute.xlu0 %726
  %728 = vrot.lane.b32.xlu0 %v22, 32
  %v729 = vpop.permute.xlu0 %728
  %730 = vrot.lane.b32.xlu0 %v23, 32
  %v731 = vpop.permute.xlu0 %730
  %732 = vrot.lane.b32.xlu0 %v24, 32
  %v733 = vpop.permute.xlu0 %732
  %734 = vrot.lane.b32.xlu0 %v25, 32
  %v735 = vpop.permute.xlu0 %734
  %736 = vrot.lane.b32.xlu0 %v26, 32
  %v737 = vpop.permute.xlu0 %736
  %738 = vrot.lane.b32.xlu0 %v27, 32
  %v739 = vpop.permute.xlu0 %738
  %740 = vrot.lane.b32.xlu0 %v28, 32
  %v741 = vpop.permute.xlu0 %740
  %742 = vrot.lane.b32.xlu0 %v29, 32
  %v743 = vpop.permute.xlu0 %742
  %744 = vrot.lane.b32.xlu0 %v30, 32
  %v745 = vpop.permute.xlu0 %744
  %746 = vrot.lane.b32.xlu0 %v31, 32
  %v747 = vpop.permute.xlu0 %746
  %748 = vrot.lane.b32.xlu0 %v32, 32
  %v749 = vpop.permute.xlu0 %748
  %v766 = vsel %vm436, %v686, %v719
  %v767 = vsel %vm436, %v687, %v721
  %v768 = vsel %vm436, %v688, %v723
  %v769 = vsel %vm436, %v689, %v725
  %v770 = vsel %vm436, %v690, %v727
  %v771 = vsel %vm436, %v691, %v729
  %v772 = vsel %vm436, %v692, %v731
  %v773 = vsel %vm436, %v693, %v733
  %v774 = vsel %vm436, %v694, %v735
  %v775 = vsel %vm436, %v695, %v737
  %v776 = vsel %vm436, %v696, %v739
  %v777 = vsel %vm436, %v697, %v741
  %v778 = vsel %vm436, %v698, %v743
  %v779 = vsel %vm436, %v699, %v745
  %v780 = vsel %vm436, %v700, %v747
  %v781 = vsel %vm436, %v701, %v749
  %v782 = vld [vmem:[%s2] sm:$0xff]
  %v783 = vld [vmem:[%s2 + $0x8] sm:$0xff]
  %v784 = vld [vmem:[%s2 + $0x10] sm:$0xff]
  %v785 = vld [vmem:[%s2 + $0x18] sm:$0xff]
  %v786 = vld [vmem:[%s2 + $0x20] sm:$0xff]
  %v787 = vld [vmem:[%s2 + $0x28] sm:$0xff]
  %v788 = vld [vmem:[%s2 + $0x30] sm:$0xff]
  %v789 = vld [vmem:[%s2 + $0x38] sm:$0xff]
  %vm790 = vcmask 523264
  %v792 = vsel %vm790, %v766, 0
  %v795 = vsel %vm790, %v767, 0
  %v798 = vsel %vm790, %v768, 0
  %v801 = vsel %vm790, %v769, 0
  %v804 = vsel %vm790, %v770, 0
  %v807 = vsel %vm790, %v771, 0
  %v810 = vsel %vm790, %v772, 0
  %v813 = vsel %vm790, %v773, 0
  %v816 = vsel %vm790, %v774, 0
  %v819 = vsel %vm790, %v775, 0
  %v822 = vsel %vm790, %v776, 0
  %v825 = vsel %vm790, %v777, 0
  %v828 = vsel %vm790, %v778, 0
  %v831 = vsel %vm790, %v779, 0
  %v834 = vsel %vm790, %v780, 0
  %v837 = vsel %vm790, %v781, 0
  %839 = vmatprep.subr.mxu0 0.0
  %840 = vmatpush1.msra.mxu0 %v782
  %841 = vmatprep.subr.mxu0 0.0
  %842 = vmatpush1.msra.mxu0 %v783
  %843 = vmatprep.subr.mxu0 0.0
  %844 = vmatpush1.msra.mxu0 %v784
  %845 = vmatprep.subr.mxu0 0.0
  %846 = vmatpush1.msra.mxu0 %v785
  %847 = vmatprep.subr.mxu0 0.0
  %848 = vmatpush1.msra.mxu0 %v786
  %849 = vmatprep.subr.mxu0 0.0
  %850 = vmatpush1.msra.mxu0 %v787
  %851 = vmatprep.subr.mxu0 0.0
  %852 = vmatpush1.msra.mxu0 %v788
  %853 = vmatprep.subr.mxu0 0.0
  %854 = vmatpush1.msra.mxu0 %v789
  %855 = vmatprep.subr.mxu0 0.0
  %856 = vmatpush1.msra.mxu0 0.0
  %857 = vmatprep.subr.mxu0 0.0
  %858 = vmatpush1.msra.mxu0 0.0
  %859 = vmatprep.subr.mxu0 0.0
  %860 = vmatpush1.msra.mxu0 0.0
  %861 = vmatprep.subr.mxu0 0.0
  %862 = vmatpush1.msra.mxu0 0.0
  %863 = vmatprep.subr.mxu0 0.0
  %864 = vmatpush1.msra.mxu0 0.0
  %865 = vmatprep.subr.mxu0 0.0
  %866 = vmatpush1.msra.mxu0 0.0
  %867 = vmatprep.subr.mxu0 0.0
  %868 = vmatpush1.msra.mxu0 0.0
  %869 = vmatprep.subr.mxu0 0.0
  %870 = vmatpush1.msra.mxu0 0.0
  %871 = vmatprep.subr.mxu0 0.0
  %872 = vmatpush1.msra.mxu0 0.0
  %873 = vmatprep.subr.mxu0 0.0
  %874 = vmatpush1.msra.mxu0 0.0
  %875 = vmatprep.subr.mxu0 0.0
  %876 = vmatpush1.msra.mxu0 0.0
  %877 = vmatprep.subr.mxu0 0.0
  %878 = vmatpush1.msra.mxu0 0.0
  %879 = vmatprep.subr.mxu0 0.0
  %880 = vmatpush1.msra.mxu0 0.0
  %881 = vmatprep.subr.mxu0 0.0
  %882 = vmatpush1.msra.mxu0 0.0
  %883 = vmatprep.subr.mxu0 0.0
  %884 = vmatpush1.msra.mxu0 0.0
  %885 = vmatprep.subr.mxu0 0.0
  %886 = vmatpush1.msra.mxu0 0.0
  %887 = vmatprep.subr.mxu0 0.0
  %888 = vmatpush1.msra.mxu0 0.0
  %889 = vmatprep.subr.mxu0 0.0
  %890 = vmatpush1.msra.mxu0 0.0
  %891 = vmatprep.subr.mxu0 0.0
  %892 = vmatpush1.msra.mxu0 0.0
  %893 = vmatprep.subr.mxu0 0.0
  %894 = vmatpush1.msra.mxu0 0.0
  %895 = vmatprep.subr.mxu0 0.0
  %896 = vmatpush1.msra.mxu0 0.0
  %897 = vmatprep.subr.mxu0 0.0
  %898 = vmatpush1.msra.mxu0 0.0
  %899 = vmatprep.subr.mxu0 0.0
  %900 = vmatpush1.msra.mxu0 0.0
  %901 = vmatprep.subr.mxu0 0.0
  %902 = vmatpush1.msra.mxu0 0.0
  %903 = vmatprep.mubr.f32.mxu0 0.0
  %904 = vmatmul.mubr.f32.gmra.mrb[0].mxu0 %v792
  %v905 = vpop.f32.mrb[0].mxu0
  %v906 = vadd.f32 0.0, %v905
  %v907 = vpop.f32.mrb[0].mxu0
  %908 = vmatprep.mubr.f32.mxu0 0.0
  %909 = vmatmul.mubr.f32.gmra.mrb[0].mxu0 %v795
  %v910 = vpop.f32.mrb[0].mxu0
  %v911 = vadd.f32 0.0, %v910
  %v912 = vpop.f32.mrb[0].mxu0
  %913 = vmatprep.mubr.f32.mxu0 0.0
  %914 = vmatmul.mubr.f32.gmra.mrb[0].mxu0 %v798
  %v915 = vpop.f32.mrb[0].mxu0
  %v916 = vadd.f32 0.0, %v915
  %v917 = vpop.f32.mrb[0].mxu0
  %918 = vmatprep.mubr.f32.mxu0 0.0
  %919 = vmatmul.mubr.f32.gmra.mrb[0].mxu0 %v801
  %v920 = vpop.f32.mrb[0].mxu0
  %v921 = vadd.f32 0.0, %v920
  %v922 = vpop.f32.mrb[0].mxu0
  %923 = vmatprep.mubr.f32.mxu0 0.0
  %924 = vmatmul.mubr.f32.gmra.mrb[0].mxu0 %v804
  %v925 = vpop.f32.mrb[0].mxu0
  %v926 = vadd.f32 0.0, %v925
  %v927 = vpop.f32.mrb[0].mxu0
  %928 = vmatprep.mubr.f32.mxu0 0.0
  %929 = vmatmul.mubr.f32.gmra.mrb[0].mxu0 %v807
  %v930 = vpop.f32.mrb[0].mxu0
  %v931 = vadd.f32 0.0, %v930
  %v932 = vpop.f32.mrb[0].mxu0
  %933 = vmatprep.mubr.f32.mxu0 0.0
  %934 = vmatmul.mubr.f32.gmra.mrb[0].mxu0 %v810
  %v935 = vpop.f32.mrb[0].mxu0
  %v936 = vadd.f32 0.0, %v935
  %v937 = vpop.f32.mrb[0].mxu0
  %938 = vmatprep.mubr.f32.mxu0 0.0
  %939 = vmatmul.mubr.f32.gmra.mrb[0].mxu0 %v813
  %v940 = vpop.f32.mrb[0].mxu0
  %v941 = vadd.f32 0.0, %v940
  %v942 = vpop.f32.mrb[0].mxu0
  %943 = vmatprep.mubr.f32.mxu0 0.0
  %944 = vmatmul.mubr.f32.gmra.mrb[0].mxu0 %v816
  %v945 = vpop.f32.mrb[0].mxu0
  %v946 = vadd.f32 0.0, %v945
  %v947 = vpop.f32.mrb[0].mxu0
  %948 = vmatprep.mubr.f32.mxu0 0.0
  %949 = vmatmul.mubr.f32.gmra.mrb[0].mxu0 %v819
  %v950 = vpop.f32.mrb[0].mxu0
  %v951 = vadd.f32 0.0, %v950
  %v952 = vpop.f32.mrb[0].mxu0
  %953 = vmatprep.mubr.f32.mxu0 0.0
  %954 = vmatmul.mubr.f32.gmra.mrb[0].mxu0 %v822
  %v955 = vpop.f32.mrb[0].mxu0
  %v956 = vadd.f32 0.0, %v955
  %v957 = vpop.f32.mrb[0].mxu0
  %958 = vmatprep.mubr.f32.mxu0 0.0
  %959 = vmatmul.mubr.f32.gmra.mrb[0].mxu0 %v825
  %v960 = vpop.f32.mrb[0].mxu0
  %v961 = vadd.f32 0.0, %v960
  %v962 = vpop.f32.mrb[0].mxu0
  %963 = vmatprep.mubr.f32.mxu0 0.0
  %964 = vmatmul.mubr.f32.gmra.mrb[0].mxu0 %v828
  %v965 = vpop.f32.mrb[0].mxu0
  %v966 = vadd.f32 0.0, %v965
  %v967 = vpop.f32.mrb[0].mxu0
  %968 = vmatprep.mubr.f32.mxu0 0.0
  %969 = vmatmul.mubr.f32.gmra.mrb[0].mxu0 %v831
  %v970 = vpop.f32.mrb[0].mxu0
  %v971 = vadd.f32 0.0, %v970
  %v972 = vpop.f32.mrb[0].mxu0
  %973 = vmatprep.mubr.f32.mxu0 0.0
  %974 = vmatmul.mubr.f32.gmra.mrb[0].mxu0 %v834
  %v975 = vpop.f32.mrb[0].mxu0
  %v976 = vadd.f32 0.0, %v975
  %v977 = vpop.f32.mrb[0].mxu0
  %978 = vmatprep.mubr.f32.mxu0 0.0
  %979 = vmatmul.mubr.f32.gmra.mrb[0].mxu0 %v837
  %v980 = vpop.f32.mrb[0].mxu0
  %v981 = vadd.f32 0.0, %v980
  %v982 = vpop.f32.mrb[0].mxu0
  %983 = vdwg.mxu0
  %985 = vrot.lane.b32.xlu0 %v669, 96
  %v986 = vpop.permute.xlu0 %985
  %v988 = vadd.f32 %v906, %v986
  %v989 = vadd.f32 %v911, %v986
  %v990 = vadd.f32 %v916, %v986
  %v991 = vadd.f32 %v921, %v986
  %v992 = vadd.f32 %v926, %v986
  %v993 = vadd.f32 %v931, %v986
  %v994 = vadd.f32 %v936, %v986
  %v995 = vadd.f32 %v941, %v986
  %v996 = vadd.f32 %v946, %v986
  %v997 = vadd.f32 %v951, %v986
  %v998 = vadd.f32 %v956, %v986
  %v999 = vadd.f32 %v961, %v986
  %v1000 = vadd.f32 %v966, %v986
  %v1001 = vadd.f32 %v971, %v986
  %v1002 = vadd.f32 %v976, %v986
  %v1003 = vadd.f32 %v981, %v986
  %1020 = vrot.lane.b32.xlu0 %v906, 96
  %v1021 = vpop.permute.xlu0 %1020
  %1022 = vrot.lane.b32.xlu0 %v911, 96
  %v1023 = vpop.permute.xlu0 %1022
  %1024 = vrot.lane.b32.xlu0 %v916, 96
  %v1025 = vpop.permute.xlu0 %1024
  %1026 = vrot.lane.b32.xlu0 %v921, 96
  %v1027 = vpop.permute.xlu0 %1026
  %1028 = vrot.lane.b32.xlu0 %v926, 96
  %v1029 = vpop.permute.xlu0 %1028
  %1030 = vrot.lane.b32.xlu0 %v931, 96
  %v1031 = vpop.permute.xlu0 %1030
  %1032 = vrot.lane.b32.xlu0 %v936, 96
  %v1033 = vpop.permute.xlu0 %1032
  %1034 = vrot.lane.b32.xlu0 %v941, 96
  %v1035 = vpop.permute.xlu0 %1034
  %1036 = vrot.lane.b32.xlu0 %v946, 96
  %v1037 = vpop.permute.xlu0 %1036
  %1038 = vrot.lane.b32.xlu0 %v951, 96
  %v1039 = vpop.permute.xlu0 %1038
  %1040 = vrot.lane.b32.xlu0 %v956, 96
  %v1041 = vpop.permute.xlu0 %1040
  %1042 = vrot.lane.b32.xlu0 %v961, 96
  %v1043 = vpop.permute.xlu0 %1042
  %1044 = vrot.lane.b32.xlu0 %v966, 96
  %v1045 = vpop.permute.xlu0 %1044
  %1046 = vrot.lane.b32.xlu0 %v971, 96
  %v1047 = vpop.permute.xlu0 %1046
  %1048 = vrot.lane.b32.xlu0 %v976, 96
  %v1049 = vpop.permute.xlu0 %1048
  %1050 = vrot.lane.b32.xlu0 %v981, 96
  %v1051 = vpop.permute.xlu0 %1050
  %v1052 = vsel %vm436, %v1021, 0
  %v1054 = vsel %vm436, %v1023, 0
  %v1056 = vsel %vm436, %v1025, 0
  %v1058 = vsel %vm436, %v1027, 0
  %v1060 = vsel %vm436, %v1029, 0
  %v1062 = vsel %vm436, %v1031, 0
  %v1064 = vsel %vm436, %v1033, 0
  %v1066 = vsel %vm436, %v1035, 0
  %v1068 = vsel %vm436, %v1037, 0
  %v1070 = vsel %vm436, %v1039, 0
  %v1072 = vsel %vm436, %v1041, 0
  %v1074 = vsel %vm436, %v1043, 0
  %v1076 = vsel %vm436, %v1045, 0
  %v1078 = vsel %vm436, %v1047, 0
  %v1080 = vsel %vm436, %v1049, 0
  %v1082 = vsel %vm436, %v1051, 0
  %1084 = vmatprep.subr.mxu0 0.0
  %1085 = vmatpush1.msra.mxu0 %v50
  %1086 = vmatprep.subr.mxu0 0.0
  %1087 = vmatpush1.msra.mxu0 %v51
  %1088 = vmatprep.subr.mxu0 0.0
  %1089 = vmatpush1.msra.mxu0 %v52
  %1090 = vmatprep.subr.mxu0 0.0
  %1091 = vmatpush1.msra.mxu0 %v53
  %1092 = vmatprep.subr.mxu0 0.0
  %1093 = vmatpush1.msra.mxu0 0.0
  %1094 = vmatprep.subr.mxu0 0.0
  %1095 = vmatpush1.msra.mxu0 0.0
  %1096 = vmatprep.subr.mxu0 0.0
  %1097 = vmatpush1.msra.mxu0 0.0
  %1098 = vmatprep.subr.mxu0 0.0
  %1099 = vmatpush1.msra.mxu0 0.0
  %1100 = vmatprep.subr.mxu0 0.0
  %1101 = vmatpush1.msra.mxu0 0.0
  %1102 = vmatprep.subr.mxu0 0.0
  %1103 = vmatpush1.msra.mxu0 0.0
  %1104 = vmatprep.subr.mxu0 0.0
  %1105 = vmatpush1.msra.mxu0 0.0
  %1106 = vmatprep.subr.mxu0 0.0
  %1107 = vmatpush1.msra.mxu0 0.0
  %1108 = vmatprep.subr.mxu0 0.0
  %1109 = vmatpush1.msra.mxu0 0.0
  %1110 = vmatprep.subr.mxu0 0.0
  %1111 = vmatpush1.msra.mxu0 0.0
  %1112 = vmatprep.subr.mxu0 0.0
  %1113 = vmatpush1.msra.mxu0 0.0
  %1114 = vmatprep.subr.mxu0 0.0
  %1115 = vmatpush1.msra.mxu0 0.0
  %1116 = vmatprep.subr.mxu0 0.0
  %1117 = vmatpush1.msra.mxu0 0.0
  %1118 = vmatprep.subr.mxu0 0.0
  %1119 = vmatpush1.msra.mxu0 0.0
  %1120 = vmatprep.subr.mxu0 0.0
  %1121 = vmatpush1.msra.mxu0 0.0
  %1122 = vmatprep.subr.mxu0 0.0
  %1123 = vmatpush1.msra.mxu0 0.0
  %1124 = vmatprep.subr.mxu0 0.0
  %1125 = vmatpush1.msra.mxu0 0.0
  %1126 = vmatprep.subr.mxu0 0.0
  %1127 = vmatpush1.msra.mxu0 0.0
  %1128 = vmatprep.subr.mxu0 0.0
  %1129 = vmatpush1.msra.mxu0 0.0
  %1130 = vmatprep.subr.mxu0 0.0
  %1131 = vmatpush1.msra.mxu0 0.0
  %1132 = vmatprep.subr.mxu0 0.0
  %1133 = vmatpush1.msra.mxu0 0.0
  %1134 = vmatprep.subr.mxu0 0.0
  %1135 = vmatpush1.msra.mxu0 0.0
  %1136 = vmatprep.subr.mxu0 0.0
  %1137 = vmatpush1.msra.mxu0 0.0
  %1138 = vmatprep.subr.mxu0 0.0
  %1139 = vmatpush1.msra.mxu0 0.0
  %1140 = vmatprep.subr.mxu0 0.0
  %1141 = vmatpush1.msra.mxu0 0.0
  %1142 = vmatprep.subr.mxu0 0.0
  %1143 = vmatpush1.msra.mxu0 0.0
  %1144 = vmatprep.subr.mxu0 0.0
  %1145 = vmatpush1.msra.mxu0 0.0
  %1146 = vmatprep.subr.mxu0 0.0
  %1147 = vmatpush1.msra.mxu0 0.0
  %1148 = vmatprep.mubr.f32.mxu0 0.0
  %1149 = vmatmul.mubr.f32.gmra.mrb[0].mxu0 %v1052
  %v1150 = vpop.f32.mrb[0].mxu0
  %v1151 = vadd.f32 0.0, %v1150
  %v1152 = vpop.f32.mrb[0].mxu0
  %1153 = vmatprep.mubr.f32.mxu0 0.0
  %1154 = vmatmul.mubr.f32.gmra.mrb[0].mxu0 %v1054
  %v1155 = vpop.f32.mrb[0].mxu0
  %v1156 = vadd.f32 0.0, %v1155
  %v1157 = vpop.f32.mrb[0].mxu0
  %1158 = vmatprep.mubr.f32.mxu0 0.0
  %1159 = vmatmul.mubr.f32.gmra.mrb[0].mxu0 %v1056
  %v1160 = vpop.f32.mrb[0].mxu0
  %v1161 = vadd.f32 0.0, %v1160
  %v1162 = vpop.f32.mrb[0].mxu0
  %1163 = vmatprep.mubr.f32.mxu0 0.0
  %1164 = vmatmul.mubr.f32.gmra.mrb[0].mxu0 %v1058
  %v1165 = vpop.f32.mrb[0].mxu0
  %v1166 = vadd.f32 0.0, %v1165
  %v1167 = vpop.f32.mrb[0].mxu0
  %1168 = vmatprep.mubr.f32.mxu0 0.0
  %1169 = vmatmul.mubr.f32.gmra.mrb[0].mxu0 %v1060
  %v1170 = vpop.f32.mrb[0].mxu0
  %v1171 = vadd.f32 0.0, %v1170
  %v1172 = vpop.f32.mrb[0].mxu0
  %1173 = vmatprep.mubr.f32.mxu0 0.0
  %1174 = vmatmul.mubr.f32.gmra.mrb[0].mxu0 %v1062
  %v1175 = vpop.f32.mrb[0].mxu0
  %v1176 = vadd.f32 0.0, %v1175
  %v1177 = vpop.f32.mrb[0].mxu0
  %1178 = vmatprep.mubr.f32.mxu0 0.0
  %1179 = vmatmul.mubr.f32.gmra.mrb[0].mxu0 %v1064
  %v1180 = vpop.f32.mrb[0].mxu0
  %v1181 = vadd.f32 0.0, %v1180
  %v1182 = vpop.f32.mrb[0].mxu0
  %1183 = vmatprep.mubr.f32.mxu0 0.0
  %1184 = vmatmul.mubr.f32.gmra.mrb[0].mxu0 %v1066
  %v1185 = vpop.f32.mrb[0].mxu0
  %v1186 = vadd.f32 0.0, %v1185
  %v1187 = vpop.f32.mrb[0].mxu0
  %1188 = vmatprep.mubr.f32.mxu0 0.0
  %1189 = vmatmul.mubr.f32.gmra.mrb[0].mxu0 %v1068
  %v1190 = vpop.f32.mrb[0].mxu0
  %v1191 = vadd.f32 0.0, %v1190
  %v1192 = vpop.f32.mrb[0].mxu0
  %1193 = vmatprep.mubr.f32.mxu0 0.0
  %1194 = vmatmul.mubr.f32.gmra.mrb[0].mxu0 %v1070
  %v1195 = vpop.f32.mrb[0].mxu0
  %v1196 = vadd.f32 0.0, %v1195
  %v1197 = vpop.f32.mrb[0].mxu0
  %1198 = vmatprep.mubr.f32.mxu0 0.0
  %1199 = vmatmul.mubr.f32.gmra.mrb[0].mxu0 %v1072
  %v1200 = vpop.f32.mrb[0].mxu0
  %v1201 = vadd.f32 0.0, %v1200
  %v1202 = vpop.f32.mrb[0].mxu0
  %1203 = vmatprep.mubr.f32.mxu0 0.0
  %1204 = vmatmul.mubr.f32.gmra.mrb[0].mxu0 %v1074
  %v1205 = vpop.f32.mrb[0].mxu0
  %v1206 = vadd.f32 0.0, %v1205
  %v1207 = vpop.f32.mrb[0].mxu0
  %1208 = vmatprep.mubr.f32.mxu0 0.0
  %1209 = vmatmul.mubr.f32.gmra.mrb[0].mxu0 %v1076
  %v1210 = vpop.f32.mrb[0].mxu0
  %v1211 = vadd.f32 0.0, %v1210
  %v1212 = vpop.f32.mrb[0].mxu0
  %1213 = vmatprep.mubr.f32.mxu0 0.0
  %1214 = vmatmul.mubr.f32.gmra.mrb[0].mxu0 %v1078
  %v1215 = vpop.f32.mrb[0].mxu0
  %v1216 = vadd.f32 0.0, %v1215
  %v1217 = vpop.f32.mrb[0].mxu0
  %1218 = vmatprep.mubr.f32.mxu0 0.0
  %1219 = vmatmul.mubr.f32.gmra.mrb[0].mxu0 %v1080
  %v1220 = vpop.f32.mrb[0].mxu0
  %v1221 = vadd.f32 0.0, %v1220
  %v1222 = vpop.f32.mrb[0].mxu0
  %1223 = vmatprep.mubr.f32.mxu0 0.0
  %1224 = vmatmul.mubr.f32.gmra.mrb[0].mxu0 %v1082
  %v1225 = vpop.f32.mrb[0].mxu0
  %v1226 = vadd.f32 0.0, %v1225
  %v1227 = vpop.f32.mrb[0].mxu0
  %1228 = vdwg.mxu0
  %vm1229 = vcmask 130048
  %v1230 = vsel %vm1229, %v1151, -inf
  %1231 = vmax.xlane.f32.xlu0 %v1230
  %v1232 = vpop.xlane.xlu0 %1231
  %v1233 = vsel %vm1229, %v1156, -inf
  %1234 = vmax.xlane.f32.xlu0 %v1233
  %v1235 = vpop.xlane.xlu0 %1234
  %v1236 = vsel %vm1229, %v1161, -inf
  %1237 = vmax.xlane.f32.xlu0 %v1236
  %v1238 = vpop.xlane.xlu0 %1237
  %v1239 = vsel %vm1229, %v1166, -inf
  %1240 = vmax.xlane.f32.xlu0 %v1239
  %v1241 = vpop.xlane.xlu0 %1240
  %v1242 = vsel %vm1229, %v1171, -inf
  %1243 = vmax.xlane.f32.xlu0 %v1242
  %v1244 = vpop.xlane.xlu0 %1243
  %v1245 = vsel %vm1229, %v1176, -inf
  %1246 = vmax.xlane.f32.xlu0 %v1245
  %v1247 = vpop.xlane.xlu0 %1246
  %v1248 = vsel %vm1229, %v1181, -inf
  %1249 = vmax.xlane.f32.xlu0 %v1248
  %v1250 = vpop.xlane.xlu0 %1249
  %v1251 = vsel %vm1229, %v1186, -inf
  %1252 = vmax.xlane.f32.xlu0 %v1251
  %v1253 = vpop.xlane.xlu0 %1252
  %v1254 = vsel %vm1229, %v1191, -inf
  %1255 = vmax.xlane.f32.xlu0 %v1254
  %v1256 = vpop.xlane.xlu0 %1255
  %v1257 = vsel %vm1229, %v1196, -inf
  %1258 = vmax.xlane.f32.xlu0 %v1257
  %v1259 = vpop.xlane.xlu0 %1258
  %v1260 = vsel %vm1229, %v1201, -inf
  %1261 = vmax.xlane.f32.xlu0 %v1260
  %v1262 = vpop.xlane.xlu0 %1261
  %v1263 = vsel %vm1229, %v1206, -inf
  %1264 = vmax.xlane.f32.xlu0 %v1263
  %v1265 = vpop.xlane.xlu0 %1264
  %v1266 = vsel %vm1229, %v1211, -inf
  %1267 = vmax.xlane.f32.xlu0 %v1266
  %v1268 = vpop.xlane.xlu0 %1267
  %v1269 = vsel %vm1229, %v1216, -inf
  %1270 = vmax.xlane.f32.xlu0 %v1269
  %v1271 = vpop.xlane.xlu0 %1270
  %v1272 = vsel %vm1229, %v1221, -inf
  %1273 = vmax.xlane.f32.xlu0 %v1272
  %v1274 = vpop.xlane.xlu0 %1273
  %v1275 = vsel %vm1229, %v1226, -inf
  %1276 = vmax.xlane.f32.xlu0 %v1275
  %v1277 = vpop.xlane.xlu0 %1276
  %v1278 = vsub.f32 %v1151, %v1232
  %v1279 = vsub.f32 %v1156, %v1235
  %v1280 = vsub.f32 %v1161, %v1238
  %v1281 = vsub.f32 %v1166, %v1241
  %v1282 = vsub.f32 %v1171, %v1244
  %v1283 = vsub.f32 %v1176, %v1247
  %v1284 = vsub.f32 %v1181, %v1250
  %v1285 = vsub.f32 %v1186, %v1253
  %v1286 = vsub.f32 %v1191, %v1256
  %v1287 = vsub.f32 %v1196, %v1259
  %v1288 = vsub.f32 %v1201, %v1262
  %v1289 = vsub.f32 %v1206, %v1265
  %v1290 = vsub.f32 %v1211, %v1268
  %v1291 = vsub.f32 %v1216, %v1271
  %v1292 = vsub.f32 %v1221, %v1274
  %v1293 = vsub.f32 %v1226, %v1277
  %v1294 = vmul.f32 %v1278, 1.442695
  %v1295 = vpow.pop %v1294
  %v1296 = vmul.f32 %v1279, 1.442695
  %v1297 = vpow.pop %v1296
  %v1298 = vmul.f32 %v1280, 1.442695
  %v1299 = vpow.pop %v1298
  %v1300 = vmul.f32 %v1281, 1.442695
  %v1301 = vpow.pop %v1300
  %v1302 = vmul.f32 %v1282, 1.442695
  %v1303 = vpow.pop %v1302
  %v1304 = vmul.f32 %v1283, 1.442695
  %v1305 = vpow.pop %v1304
  %v1306 = vmul.f32 %v1284, 1.442695
  %v1307 = vpow.pop %v1306
  %v1308 = vmul.f32 %v1285, 1.442695
  %v1309 = vpow.pop %v1308
  %v1310 = vmul.f32 %v1286, 1.442695
  %v1311 = vpow.pop %v1310
  %v1312 = vmul.f32 %v1287, 1.442695
  %v1313 = vpow.pop %v1312
  %v1314 = vmul.f32 %v1288, 1.442695
  %v1315 = vpow.pop %v1314
  %v1316 = vmul.f32 %v1289, 1.442695
  %v1317 = vpow.pop %v1316
  %v1318 = vmul.f32 %v1290, 1.442695
  %v1319 = vpow.pop %v1318
  %v1320 = vmul.f32 %v1291, 1.442695
  %v1321 = vpow.pop %v1320
  %v1322 = vmul.f32 %v1292, 1.442695
  %v1323 = vpow.pop %v1322
  %v1324 = vmul.f32 %v1293, 1.442695
  %v1325 = vpow.pop %v1324
  %v1326 = vsel %vm1229, %v1295, 0.0
  %1327 = vadd.xlane.f32.xlu0 %v1326
  %v1328 = vpop.xlane.xlu0 %1327
  %v1329 = vsel %vm1229, %v1297, 0.0
  %1330 = vadd.xlane.f32.xlu0 %v1329
  %v1331 = vpop.xlane.xlu0 %1330
  %v1332 = vsel %vm1229, %v1299, 0.0
  %1333 = vadd.xlane.f32.xlu0 %v1332
  %v1334 = vpop.xlane.xlu0 %1333
  %v1335 = vsel %vm1229, %v1301, 0.0
  %1336 = vadd.xlane.f32.xlu0 %v1335
  %v1337 = vpop.xlane.xlu0 %1336
  %v1338 = vsel %vm1229, %v1303, 0.0
  %1339 = vadd.xlane.f32.xlu0 %v1338
  %v1340 = vpop.xlane.xlu0 %1339
  %v1341 = vsel %vm1229, %v1305, 0.0
  %1342 = vadd.xlane.f32.xlu0 %v1341
  %v1343 = vpop.xlane.xlu0 %1342
  %v1344 = vsel %vm1229, %v1307, 0.0
  %1345 = vadd.xlane.f32.xlu0 %v1344
  %v1346 = vpop.xlane.xlu0 %1345
  %v1347 = vsel %vm1229, %v1309, 0.0
  %1348 = vadd.xlane.f32.xlu0 %v1347
  %v1349 = vpop.xlane.xlu0 %1348
  %v1350 = vsel %vm1229, %v1311, 0.0
  %1351 = vadd.xlane.f32.xlu0 %v1350
  %v1352 = vpop.xlane.xlu0 %1351
  %v1353 = vsel %vm1229, %v1313, 0.0
  %1354 = vadd.xlane.f32.xlu0 %v1353
  %v1355 = vpop.xlane.xlu0 %1354
  %v1356 = vsel %vm1229, %v1315, 0.0
  %1357 = vadd.xlane.f32.xlu0 %v1356
  %v1358 = vpop.xlane.xlu0 %1357
  %v1359 = vsel %vm1229, %v1317, 0.0
  %1360 = vadd.xlane.f32.xlu0 %v1359
  %v1361 = vpop.xlane.xlu0 %1360
  %v1362 = vsel %vm1229, %v1319, 0.0
  %1363 = vadd.xlane.f32.xlu0 %v1362
  %v1364 = vpop.xlane.xlu0 %1363
  %v1365 = vsel %vm1229, %v1321, 0.0
  %1366 = vadd.xlane.f32.xlu0 %v1365
  %v1367 = vpop.xlane.xlu0 %1366
  %v1368 = vsel %vm1229, %v1323, 0.0
  %1369 = vadd.xlane.f32.xlu0 %v1368
  %v1370 = vpop.xlane.xlu0 %1369
  %v1371 = vsel %vm1229, %v1325, 0.0
  %1372 = vadd.xlane.f32.xlu0 %v1371
  %v1373 = vpop.xlane.xlu0 %1372
  %v1374 = vrcp.pop %v1328
  %v1375 = vrcp.pop %v1331
  %v1376 = vrcp.pop %v1334
  %v1377 = vrcp.pop %v1337
  %v1378 = vrcp.pop %v1340
  %v1379 = vrcp.pop %v1343
  %v1380 = vrcp.pop %v1346
  %v1381 = vrcp.pop %v1349
  %v1382 = vrcp.pop %v1352
  %v1383 = vrcp.pop %v1355
  %v1384 = vrcp.pop %v1358
  %v1385 = vrcp.pop %v1361
  %v1386 = vrcp.pop %v1364
  %v1387 = vrcp.pop %v1367
  %v1388 = vrcp.pop %v1370
  %v1389 = vrcp.pop %v1373
  %v1390 = vmul.f32 %v1295, %v1374
  %v1391 = vmul.f32 %v1297, %v1375
  %v1392 = vmul.f32 %v1299, %v1376
  %v1393 = vmul.f32 %v1301, %v1377
  %v1394 = vmul.f32 %v1303, %v1378
  %v1395 = vmul.f32 %v1305, %v1379
  %v1396 = vmul.f32 %v1307, %v1380
  %v1397 = vmul.f32 %v1309, %v1381
  %v1398 = vmul.f32 %v1311, %v1382
  %v1399 = vmul.f32 %v1313, %v1383
  %v1400 = vmul.f32 %v1315, %v1384
  %v1401 = vmul.f32 %v1317, %v1385
  %v1402 = vmul.f32 %v1319, %v1386
  %v1403 = vmul.f32 %v1321, %v1387
  %v1404 = vmul.f32 %v1323, %v1388
  %v1405 = vmul.f32 %v1325, %v1389
  %v1407 = vsel %vm1229, %v1390, 0
  %v1410 = vsel %vm1229, %v1391, 0
  %v1413 = vsel %vm1229, %v1392, 0
  %v1416 = vsel %vm1229, %v1393, 0
  %v1419 = vsel %vm1229, %v1394, 0
  %v1422 = vsel %vm1229, %v1395, 0
  %v1425 = vsel %vm1229, %v1396, 0
  %v1428 = vsel %vm1229, %v1397, 0
  %v1431 = vsel %vm1229, %v1398, 0
  %v1434 = vsel %vm1229, %v1399, 0
  %v1437 = vsel %vm1229, %v1400, 0
  %v1440 = vsel %vm1229, %v1401, 0
  %v1443 = vsel %vm1229, %v1402, 0
  %v1446 = vsel %vm1229, %v1403, 0
  %v1449 = vsel %vm1229, %v1404, 0
  %v1452 = vsel %vm1229, %v1405, 0
  %1454 = vmatprep.subr.mxu0 0.0
  %1455 = vmatpush1.msra.mxu0 %v54
  %1456 = vmatprep.subr.mxu0 0.0
  %1457 = vmatpush1.msra.mxu0 %v55
  %1458 = vmatprep.subr.mxu0 0.0
  %1459 = vmatpush1.msra.mxu0 0.0
  %1460 = vmatprep.subr.mxu0 0.0
  %1461 = vmatpush1.msra.mxu0 0.0
  %1462 = vmatprep.subr.mxu0 0.0
  %1463 = vmatpush1.msra.mxu0 0.0
  %1464 = vmatprep.subr.mxu0 0.0
  %1465 = vmatpush1.msra.mxu0 0.0
  %1466 = vmatprep.subr.mxu0 0.0
  %1467 = vmatpush1.msra.mxu0 0.0
  %1468 = vmatprep.subr.mxu0 0.0
  %1469 = vmatpush1.msra.mxu0 0.0
  %1470 = vmatprep.subr.mxu0 0.0
  %1471 = vmatpush1.msra.mxu0 0.0
  %1472 = vmatprep.subr.mxu0 0.0
  %1473 = vmatpush1.msra.mxu0 0.0
  %1474 = vmatprep.subr.mxu0 0.0
  %1475 = vmatpush1.msra.mxu0 0.0
  %1476 = vmatprep.subr.mxu0 0.0
  %1477 = vmatpush1.msra.mxu0 0.0
  %1478 = vmatprep.subr.mxu0 0.0
  %1479 = vmatpush1.msra.mxu0 0.0
  %1480 = vmatprep.subr.mxu0 0.0
  %1481 = vmatpush1.msra.mxu0 0.0
  %1482 = vmatprep.subr.mxu0 0.0
  %1483 = vmatpush1.msra.mxu0 0.0
  %1484 = vmatprep.subr.mxu0 0.0
  %1485 = vmatpush1.msra.mxu0 0.0
  %1486 = vmatprep.subr.mxu0 0.0
  %1487 = vmatpush1.msra.mxu0 0.0
  %1488 = vmatprep.subr.mxu0 0.0
  %1489 = vmatpush1.msra.mxu0 0.0
  %1490 = vmatprep.subr.mxu0 0.0
  %1491 = vmatpush1.msra.mxu0 0.0
  %1492 = vmatprep.subr.mxu0 0.0
  %1493 = vmatpush1.msra.mxu0 0.0
  %1494 = vmatprep.subr.mxu0 0.0
  %1495 = vmatpush1.msra.mxu0 0.0
  %1496 = vmatprep.subr.mxu0 0.0
  %1497 = vmatpush1.msra.mxu0 0.0
  %1498 = vmatprep.subr.mxu0 0.0
  %1499 = vmatpush1.msra.mxu0 0.0
  %1500 = vmatprep.subr.mxu0 0.0
  %1501 = vmatpush1.msra.mxu0 0.0
  %1502 = vmatprep.subr.mxu0 0.0
  %1503 = vmatpush1.msra.mxu0 0.0
  %1504 = vmatprep.subr.mxu0 0.0
  %1505 = vmatpush1.msra.mxu0 0.0
  %1506 = vmatprep.subr.mxu0 0.0
  %1507 = vmatpush1.msra.mxu0 0.0
  %1508 = vmatprep.subr.mxu0 0.0
  %1509 = vmatpush1.msra.mxu0 0.0
  %1510 = vmatprep.subr.mxu0 0.0
  %1511 = vmatpush1.msra.mxu0 0.0
  %1512 = vmatprep.subr.mxu0 0.0
  %1513 = vmatpush1.msra.mxu0 0.0
  %1514 = vmatprep.subr.mxu0 0.0
  %1515 = vmatpush1.msra.mxu0 0.0
  %1516 = vmatprep.subr.mxu0 0.0
  %1517 = vmatpush1.msra.mxu0 0.0
  %1518 = vmatprep.mubr.f32.mxu0 0.0
  %1519 = vmatmul.mubr.f32.gmra.mrb[0].mxu0 %v1407
  %v1520 = vpop.f32.mrb[0].mxu0
  %v1521 = vadd.f32 0.0, %v1520
  %v1522 = vpop.f32.mrb[0].mxu0
  %1523 = vmatprep.mubr.f32.mxu0 0.0
  %1524 = vmatmul.mubr.f32.gmra.mrb[0].mxu0 %v1410
  %v1525 = vpop.f32.mrb[0].mxu0
  %v1526 = vadd.f32 0.0, %v1525
  %v1527 = vpop.f32.mrb[0].mxu0
  %1528 = vmatprep.mubr.f32.mxu0 0.0
  %1529 = vmatmul.mubr.f32.gmra.mrb[0].mxu0 %v1413
  %v1530 = vpop.f32.mrb[0].mxu0
  %v1531 = vadd.f32 0.0, %v1530
  %v1532 = vpop.f32.mrb[0].mxu0
  %1533 = vmatprep.mubr.f32.mxu0 0.0
  %1534 = vmatmul.mubr.f32.gmra.mrb[0].mxu0 %v1416
  %v1535 = vpop.f32.mrb[0].mxu0
  %v1536 = vadd.f32 0.0, %v1535
  %v1537 = vpop.f32.mrb[0].mxu0
  %1538 = vmatprep.mubr.f32.mxu0 0.0
  %1539 = vmatmul.mubr.f32.gmra.mrb[0].mxu0 %v1419
  %v1540 = vpop.f32.mrb[0].mxu0
  %v1541 = vadd.f32 0.0, %v1540
  %v1542 = vpop.f32.mrb[0].mxu0
  %1543 = vmatprep.mubr.f32.mxu0 0.0
  %1544 = vmatmul.mubr.f32.gmra.mrb[0].mxu0 %v1422
  %v1545 = vpop.f32.mrb[0].mxu0
  %v1546 = vadd.f32 0.0, %v1545
  %v1547 = vpop.f32.mrb[0].mxu0
  %1548 = vmatprep.mubr.f32.mxu0 0.0
  %1549 = vmatmul.mubr.f32.gmra.mrb[0].mxu0 %v1425
  %v1550 = vpop.f32.mrb[0].mxu0
  %v1551 = vadd.f32 0.0, %v1550
  %v1552 = vpop.f32.mrb[0].mxu0
  %1553 = vmatprep.mubr.f32.mxu0 0.0
  %1554 = vmatmul.mubr.f32.gmra.mrb[0].mxu0 %v1428
  %v1555 = vpop.f32.mrb[0].mxu0
  %v1556 = vadd.f32 0.0, %v1555
  %v1557 = vpop.f32.mrb[0].mxu0
  %1558 = vmatprep.mubr.f32.mxu0 0.0
  %1559 = vmatmul.mubr.f32.gmra.mrb[0].mxu0 %v1431
  %v1560 = vpop.f32.mrb[0].mxu0
  %v1561 = vadd.f32 0.0, %v1560
  %v1562 = vpop.f32.mrb[0].mxu0
  %1563 = vmatprep.mubr.f32.mxu0 0.0
  %1564 = vmatmul.mubr.f32.gmra.mrb[0].mxu0 %v1434
  %v1565 = vpop.f32.mrb[0].mxu0
  %v1566 = vadd.f32 0.0, %v1565
  %v1567 = vpop.f32.mrb[0].mxu0
  %1568 = vmatprep.mubr.f32.mxu0 0.0
  %1569 = vmatmul.mubr.f32.gmra.mrb[0].mxu0 %v1437
  %v1570 = vpop.f32.mrb[0].mxu0
  %v1571 = vadd.f32 0.0, %v1570
  %v1572 = vpop.f32.mrb[0].mxu0
  %1573 = vmatprep.mubr.f32.mxu0 0.0
  %1574 = vmatmul.mubr.f32.gmra.mrb[0].mxu0 %v1440
  %v1575 = vpop.f32.mrb[0].mxu0
  %v1576 = vadd.f32 0.0, %v1575
  %v1577 = vpop.f32.mrb[0].mxu0
  %1578 = vmatprep.mubr.f32.mxu0 0.0
  %1579 = vmatmul.mubr.f32.gmra.mrb[0].mxu0 %v1443
  %v1580 = vpop.f32.mrb[0].mxu0
  %v1581 = vadd.f32 0.0, %v1580
  %v1582 = vpop.f32.mrb[0].mxu0
  %1583 = vmatprep.mubr.f32.mxu0 0.0
  %1584 = vmatmul.mubr.f32.gmra.mrb[0].mxu0 %v1446
  %v1585 = vpop.f32.mrb[0].mxu0
  %v1586 = vadd.f32 0.0, %v1585
  %v1587 = vpop.f32.mrb[0].mxu0
  %1588 = vmatprep.mubr.f32.mxu0 0.0
  %1589 = vmatmul.mubr.f32.gmra.mrb[0].mxu0 %v1449
  %v1590 = vpop.f32.mrb[0].mxu0
  %v1591 = vadd.f32 0.0, %v1590
  %v1592 = vpop.f32.mrb[0].mxu0
  %1593 = vmatprep.mubr.f32.mxu0 0.0
  %1594 = vmatmul.mubr.f32.gmra.mrb[0].mxu0 %v1452
  %v1595 = vpop.f32.mrb[0].mxu0
  %v1596 = vadd.f32 0.0, %v1595
  %v1597 = vpop.f32.mrb[0].mxu0
  %1598 = vdwg.mxu0
  %1615 = vrot.lane.b32.xlu0 %v1521, 32
  %v1616 = vpop.permute.xlu0 %1615
  %1617 = vrot.lane.b32.xlu0 %v1526, 32
  %v1618 = vpop.permute.xlu0 %1617
  %1619 = vrot.lane.b32.xlu0 %v1531, 32
  %v1620 = vpop.permute.xlu0 %1619
  %1621 = vrot.lane.b32.xlu0 %v1536, 32
  %v1622 = vpop.permute.xlu0 %1621
  %1623 = vrot.lane.b32.xlu0 %v1541, 32
  %v1624 = vpop.permute.xlu0 %1623
  %1625 = vrot.lane.b32.xlu0 %v1546, 32
  %v1626 = vpop.permute.xlu0 %1625
  %1627 = vrot.lane.b32.xlu0 %v1551, 32
  %v1628 = vpop.permute.xlu0 %1627
  %1629 = vrot.lane.b32.xlu0 %v1556, 32
  %v1630 = vpop.permute.xlu0 %1629
  %1631 = vrot.lane.b32.xlu0 %v1561, 32
  %v1632 = vpop.permute.xlu0 %1631
  %1633 = vrot.lane.b32.xlu0 %v1566, 32
  %v1634 = vpop.permute.xlu0 %1633
  %1635 = vrot.lane.b32.xlu0 %v1571, 32
  %v1636 = vpop.permute.xlu0 %1635
  %1637 = vrot.lane.b32.xlu0 %v1576, 32
  %v1638 = vpop.permute.xlu0 %1637
  %1639 = vrot.lane.b32.xlu0 %v1581, 32
  %v1640 = vpop.permute.xlu0 %1639
  %1641 = vrot.lane.b32.xlu0 %v1586, 32
  %v1642 = vpop.permute.xlu0 %1641
  %1643 = vrot.lane.b32.xlu0 %v1591, 32
  %v1644 = vpop.permute.xlu0 %1643
  %1645 = vrot.lane.b32.xlu0 %v1596, 32
  %v1646 = vpop.permute.xlu0 %1645
  %v1663 = vadd.f32 %v906, %v1616
  %v1664 = vadd.f32 %v911, %v1618
  %v1665 = vadd.f32 %v916, %v1620
  %v1666 = vadd.f32 %v921, %v1622
  %v1667 = vadd.f32 %v926, %v1624
  %v1668 = vadd.f32 %v931, %v1626
  %v1669 = vadd.f32 %v936, %v1628
  %v1670 = vadd.f32 %v941, %v1630
  %v1671 = vadd.f32 %v946, %v1632
  %v1672 = vadd.f32 %v951, %v1634
  %v1673 = vadd.f32 %v956, %v1636
  %v1674 = vadd.f32 %v961, %v1638
  %v1675 = vadd.f32 %v966, %v1640
  %v1676 = vadd.f32 %v971, %v1642
  %v1677 = vadd.f32 %v976, %v1644
  %v1678 = vadd.f32 %v981, %v1646
  %1680 = vrot.lane.b32.xlu0 %v383, 32
  %v1681 = vpop.permute.xlu0 %1680
  %v1683 = vadd.f32 %v1663, %v1681
  %v1684 = vadd.f32 %v1664, %v1681
  %v1685 = vadd.f32 %v1665, %v1681
  %v1686 = vadd.f32 %v1666, %v1681
  %v1687 = vadd.f32 %v1667, %v1681
  %v1688 = vadd.f32 %v1668, %v1681
  %v1689 = vadd.f32 %v1669, %v1681
  %v1690 = vadd.f32 %v1670, %v1681
  %v1691 = vadd.f32 %v1671, %v1681
  %v1692 = vadd.f32 %v1672, %v1681
  %v1693 = vadd.f32 %v1673, %v1681
  %v1694 = vadd.f32 %v1674, %v1681
  %v1695 = vadd.f32 %v1675, %v1681
  %v1696 = vadd.f32 %v1676, %v1681
  %v1697 = vadd.f32 %v1677, %v1681
  %v1698 = vadd.f32 %v1678, %v1681
  %v1699 = vxor.u32 %v1683, 2147483648
  %v1700 = vxor.u32 %v1684, 2147483648
  %v1701 = vxor.u32 %v1685, 2147483648
  %v1702 = vxor.u32 %v1686, 2147483648
  %v1703 = vxor.u32 %v1687, 2147483648
  %v1704 = vxor.u32 %v1688, 2147483648
  %v1705 = vxor.u32 %v1689, 2147483648
  %v1706 = vxor.u32 %v1690, 2147483648
  %v1707 = vxor.u32 %v1691, 2147483648
  %v1708 = vxor.u32 %v1692, 2147483648
  %v1709 = vxor.u32 %v1693, 2147483648
  %v1710 = vxor.u32 %v1694, 2147483648
  %v1711 = vxor.u32 %v1695, 2147483648
  %v1712 = vxor.u32 %v1696, 2147483648
  %v1713 = vxor.u32 %v1697, 2147483648
  %v1714 = vxor.u32 %v1698, 2147483648
  %v1715 = vmul.f32 %v1699, 1.442695
  %v1716 = vpow.pop %v1715
  %v1717 = vmul.f32 %v1700, 1.442695
  %v1718 = vpow.pop %v1717
  %v1719 = vmul.f32 %v1701, 1.442695
  %v1720 = vpow.pop %v1719
  %v1721 = vmul.f32 %v1702, 1.442695
  %v1722 = vpow.pop %v1721
  %v1723 = vmul.f32 %v1703, 1.442695
  %v1724 = vpow.pop %v1723
  %v1725 = vmul.f32 %v1704, 1.442695
  %v1726 = vpow.pop %v1725
  %v1727 = vmul.f32 %v1705, 1.442695
  %v1728 = vpow.pop %v1727
  %v1729 = vmul.f32 %v1706, 1.442695
  %v1730 = vpow.pop %v1729
  %v1731 = vmul.f32 %v1707, 1.442695
  %v1732 = vpow.pop %v1731
  %v1733 = vmul.f32 %v1708, 1.442695
  %v1734 = vpow.pop %v1733
  %v1735 = vmul.f32 %v1709, 1.442695
  %v1736 = vpow.pop %v1735
  %v1737 = vmul.f32 %v1710, 1.442695
  %v1738 = vpow.pop %v1737
  %v1739 = vmul.f32 %v1711, 1.442695
  %v1740 = vpow.pop %v1739
  %v1741 = vmul.f32 %v1712, 1.442695
  %v1742 = vpow.pop %v1741
  %v1743 = vmul.f32 %v1713, 1.442695
  %v1744 = vpow.pop %v1743
  %v1745 = vmul.f32 %v1714, 1.442695
  %v1746 = vpow.pop %v1745
  %v1747 = vadd.f32 %v1716, 1.0
  %v1748 = vadd.f32 %v1718, 1.0
  %v1749 = vadd.f32 %v1720, 1.0
  %v1750 = vadd.f32 %v1722, 1.0
  %v1751 = vadd.f32 %v1724, 1.0
  %v1752 = vadd.f32 %v1726, 1.0
  %v1753 = vadd.f32 %v1728, 1.0
  %v1754 = vadd.f32 %v1730, 1.0
  %v1755 = vadd.f32 %v1732, 1.0
  %v1756 = vadd.f32 %v1734, 1.0
  %v1757 = vadd.f32 %v1736, 1.0
  %v1758 = vadd.f32 %v1738, 1.0
  %v1759 = vadd.f32 %v1740, 1.0
  %v1760 = vadd.f32 %v1742, 1.0
  %v1761 = vadd.f32 %v1744, 1.0
  %v1762 = vadd.f32 %v1746, 1.0
  %v1763 = vrcp.pop %v1747
  %v1764 = vmul.f32 1.0, %v1763
  %v1765 = vrcp.pop %v1748
  %v1766 = vmul.f32 1.0, %v1765
  %v1767 = vrcp.pop %v1749
  %v1768 = vmul.f32 1.0, %v1767
  %v1769 = vrcp.pop %v1750
  %v1770 = vmul.f32 1.0, %v1769
  %v1771 = vrcp.pop %v1751
  %v1772 = vmul.f32 1.0, %v1771
  %v1773 = vrcp.pop %v1752
  %v1774 = vmul.f32 1.0, %v1773
  %v1775 = vrcp.pop %v1753
  %v1776 = vmul.f32 1.0, %v1775
  %v1777 = vrcp.pop %v1754
  %v1778 = vmul.f32 1.0, %v1777
  %v1779 = vrcp.pop %v1755
  %v1780 = vmul.f32 1.0, %v1779
  %v1781 = vrcp.pop %v1756
  %v1782 = vmul.f32 1.0, %v1781
  %v1783 = vrcp.pop %v1757
  %v1784 = vmul.f32 1.0, %v1783
  %v1785 = vrcp.pop %v1758
  %v1786 = vmul.f32 1.0, %v1785
  %v1787 = vrcp.pop %v1759
  %v1788 = vmul.f32 1.0, %v1787
  %v1789 = vrcp.pop %v1760
  %v1790 = vmul.f32 1.0, %v1789
  %v1791 = vrcp.pop %v1761
  %v1792 = vmul.f32 1.0, %v1791
  %v1793 = vrcp.pop %v1762
  %v1794 = vmul.f32 1.0, %v1793
  %1796 = vset.pattern.permute.xlu0 64
  %1797 = vperm.xlu0 %1796, %v1764
  %v1798 = vpop.permute.xlu0 %1797
  %1801 = vset.pattern.permute.xlu0 64
  %1802 = vperm.xlu0 %1801, %v1766
  %v1803 = vpop.permute.xlu0 %1802
  %1806 = vset.pattern.permute.xlu0 64
  %1807 = vperm.xlu0 %1806, %v1768
  %v1808 = vpop.permute.xlu0 %1807
  %1811 = vset.pattern.permute.xlu0 64
  %1812 = vperm.xlu0 %1811, %v1770
  %v1813 = vpop.permute.xlu0 %1812
  %1816 = vset.pattern.permute.xlu0 64
  %1817 = vperm.xlu0 %1816, %v1772
  %v1818 = vpop.permute.xlu0 %1817
  %1821 = vset.pattern.permute.xlu0 64
  %1822 = vperm.xlu0 %1821, %v1774
  %v1823 = vpop.permute.xlu0 %1822
  %1826 = vset.pattern.permute.xlu0 64
  %1827 = vperm.xlu0 %1826, %v1776
  %v1828 = vpop.permute.xlu0 %1827
  %1831 = vset.pattern.permute.xlu0 64
  %1832 = vperm.xlu0 %1831, %v1778
  %v1833 = vpop.permute.xlu0 %1832
  %1836 = vset.pattern.permute.xlu0 64
  %1837 = vperm.xlu0 %1836, %v1780
  %v1838 = vpop.permute.xlu0 %1837
  %1841 = vset.pattern.permute.xlu0 64
  %1842 = vperm.xlu0 %1841, %v1782
  %v1843 = vpop.permute.xlu0 %1842
  %1846 = vset.pattern.permute.xlu0 64
  %1847 = vperm.xlu0 %1846, %v1784
  %v1848 = vpop.permute.xlu0 %1847
  %1851 = vset.pattern.permute.xlu0 64
  %1852 = vperm.xlu0 %1851, %v1786
  %v1853 = vpop.permute.xlu0 %1852
  %1856 = vset.pattern.permute.xlu0 64
  %1857 = vperm.xlu0 %1856, %v1788
  %v1858 = vpop.permute.xlu0 %1857
  %1861 = vset.pattern.permute.xlu0 64
  %1862 = vperm.xlu0 %1861, %v1790
  %v1863 = vpop.permute.xlu0 %1862
  %1866 = vset.pattern.permute.xlu0 64
  %1867 = vperm.xlu0 %1866, %v1792
  %v1868 = vpop.permute.xlu0 %1867
  %1871 = vset.pattern.permute.xlu0 64
  %1872 = vperm.xlu0 %1871, %v1794
  %v1873 = vpop.permute.xlu0 %1872
  %v1875 = vmul.f32 %v1798, %v1521
  %v1876 = vmul.f32 %v1803, %v1526
  %v1877 = vmul.f32 %v1808, %v1531
  %v1878 = vmul.f32 %v1813, %v1536
  %v1879 = vmul.f32 %v1818, %v1541
  %v1880 = vmul.f32 %v1823, %v1546
  %v1881 = vmul.f32 %v1828, %v1551
  %v1882 = vmul.f32 %v1833, %v1556
  %v1883 = vmul.f32 %v1838, %v1561
  %v1884 = vmul.f32 %v1843, %v1566
  %v1885 = vmul.f32 %v1848, %v1571
  %v1886 = vmul.f32 %v1853, %v1576
  %v1887 = vmul.f32 %v1858, %v1581
  %v1888 = vmul.f32 %v1863, %v1586
  %v1889 = vmul.f32 %v1868, %v1591
  %v1890 = vmul.f32 %v1873, %v1596
  %v1891 = vsub.f32 1.0, %v1764
  %v1892 = vsub.f32 1.0, %v1766
  %v1893 = vsub.f32 1.0, %v1768
  %v1894 = vsub.f32 1.0, %v1770
  %v1895 = vsub.f32 1.0, %v1772
  %v1896 = vsub.f32 1.0, %v1774
  %v1897 = vsub.f32 1.0, %v1776
  %v1898 = vsub.f32 1.0, %v1778
  %v1899 = vsub.f32 1.0, %v1780
  %v1900 = vsub.f32 1.0, %v1782
  %v1901 = vsub.f32 1.0, %v1784
  %v1902 = vsub.f32 1.0, %v1786
  %v1903 = vsub.f32 1.0, %v1788
  %v1904 = vsub.f32 1.0, %v1790
  %v1905 = vsub.f32 1.0, %v1792
  %v1906 = vsub.f32 1.0, %v1794
  %1908 = vset.pattern.permute.xlu0 64
  %1909 = vperm.xlu0 %1908, %v1891
  %v1910 = vpop.permute.xlu0 %1909
  %1913 = vset.pattern.permute.xlu0 64
  %1914 = vperm.xlu0 %1913, %v1892
  %v1915 = vpop.permute.xlu0 %1914
  %1918 = vset.pattern.permute.xlu0 64
  %1919 = vperm.xlu0 %1918, %v1893
  %v1920 = vpop.permute.xlu0 %1919
  %1923 = vset.pattern.permute.xlu0 64
  %1924 = vperm.xlu0 %1923, %v1894
  %v1925 = vpop.permute.xlu0 %1924
  %1928 = vset.pattern.permute.xlu0 64
  %1929 = vperm.xlu0 %1928, %v1895
  %v1930 = vpop.permute.xlu0 %1929
  %1933 = vset.pattern.permute.xlu0 64
  %1934 = vperm.xlu0 %1933, %v1896
  %v1935 = vpop.permute.xlu0 %1934
  %1938 = vset.pattern.permute.xlu0 64
  %1939 = vperm.xlu0 %1938, %v1897
  %v1940 = vpop.permute.xlu0 %1939
  %1943 = vset.pattern.permute.xlu0 64
  %1944 = vperm.xlu0 %1943, %v1898
  %v1945 = vpop.permute.xlu0 %1944
  %1948 = vset.pattern.permute.xlu0 64
  %1949 = vperm.xlu0 %1948, %v1899
  %v1950 = vpop.permute.xlu0 %1949
  %1953 = vset.pattern.permute.xlu0 64
  %1954 = vperm.xlu0 %1953, %v1900
  %v1955 = vpop.permute.xlu0 %1954
  %1958 = vset.pattern.permute.xlu0 64
  %1959 = vperm.xlu0 %1958, %v1901
  %v1960 = vpop.permute.xlu0 %1959
  %1963 = vset.pattern.permute.xlu0 64
  %1964 = vperm.xlu0 %1963, %v1902
  %v1965 = vpop.permute.xlu0 %1964
  %1968 = vset.pattern.permute.xlu0 64
  %1969 = vperm.xlu0 %1968, %v1903
  %v1970 = vpop.permute.xlu0 %1969
  %1973 = vset.pattern.permute.xlu0 64
  %1974 = vperm.xlu0 %1973, %v1904
  %v1975 = vpop.permute.xlu0 %1974
  %1978 = vset.pattern.permute.xlu0 64
  %1979 = vperm.xlu0 %1978, %v1905
  %v1980 = vpop.permute.xlu0 %1979
  %1983 = vset.pattern.permute.xlu0 64
  %1984 = vperm.xlu0 %1983, %v1906
  %v1985 = vpop.permute.xlu0 %1984
  %v1987 = vmul.f32 %v1910, %v17
  %v1988 = vmul.f32 %v1915, %v18
  %v1989 = vmul.f32 %v1920, %v19
  %v1990 = vmul.f32 %v1925, %v20
  %v1991 = vmul.f32 %v1930, %v21
  %v1992 = vmul.f32 %v1935, %v22
  %v1993 = vmul.f32 %v1940, %v23
  %v1994 = vmul.f32 %v1945, %v24
  %v1995 = vmul.f32 %v1950, %v25
  %v1996 = vmul.f32 %v1955, %v26
  %v1997 = vmul.f32 %v1960, %v27
  %v1998 = vmul.f32 %v1965, %v28
  %v1999 = vmul.f32 %v1970, %v29
  %v2000 = vmul.f32 %v1975, %v30
  %v2001 = vmul.f32 %v1980, %v31
  %v2002 = vmul.f32 %v1985, %v32
  %v2003 = vadd.f32 %v1875, %v1987
  %v2004 = vadd.f32 %v1876, %v1988
  %v2005 = vadd.f32 %v1877, %v1989
  %v2006 = vadd.f32 %v1878, %v1990
  %v2007 = vadd.f32 %v1879, %v1991
  %v2008 = vadd.f32 %v1880, %v1992
  %v2009 = vadd.f32 %v1881, %v1993
  %v2010 = vadd.f32 %v1882, %v1994
  %v2011 = vadd.f32 %v1883, %v1995
  %v2012 = vadd.f32 %v1884, %v1996
  %v2013 = vadd.f32 %v1885, %v1997
  %v2014 = vadd.f32 %v1886, %v1998
  %v2015 = vadd.f32 %v1887, %v1999
  %v2016 = vadd.f32 %v1888, %v2000
  %v2017 = vadd.f32 %v1889, %v2001
  %v2018 = vadd.f32 %v1890, %v2002
  %v2019 = vsel %vm436, %v2003, 0.0
  %2020 = vadd.xlane.f32.xlu0 %v2019
  %v2021 = vpop.xlane.xlu0 %2020
  %v2022 = vsel %vm436, %v2004, 0.0
  %2023 = vadd.xlane.f32.xlu0 %v2022
  %v2024 = vpop.xlane.xlu0 %2023
  %v2025 = vsel %vm436, %v2005, 0.0
  %2026 = vadd.xlane.f32.xlu0 %v2025
  %v2027 = vpop.xlane.xlu0 %2026
  %v2028 = vsel %vm436, %v2006, 0.0
  %2029 = vadd.xlane.f32.xlu0 %v2028
  %v2030 = vpop.xlane.xlu0 %2029
  %v2031 = vsel %vm436, %v2007, 0.0
  %2032 = vadd.xlane.f32.xlu0 %v2031
  %v2033 = vpop.xlane.xlu0 %2032
  %v2034 = vsel %vm436, %v2008, 0.0
  %2035 = vadd.xlane.f32.xlu0 %v2034
  %v2036 = vpop.xlane.xlu0 %2035
  %v2037 = vsel %vm436, %v2009, 0.0
  %2038 = vadd.xlane.f32.xlu0 %v2037
  %v2039 = vpop.xlane.xlu0 %2038
  %v2040 = vsel %vm436, %v2010, 0.0
  %2041 = vadd.xlane.f32.xlu0 %v2040
  %v2042 = vpop.xlane.xlu0 %2041
  %v2043 = vsel %vm436, %v2011, 0.0
  %2044 = vadd.xlane.f32.xlu0 %v2043
  %v2045 = vpop.xlane.xlu0 %2044
  %v2046 = vsel %vm436, %v2012, 0.0
  %2047 = vadd.xlane.f32.xlu0 %v2046
  %v2048 = vpop.xlane.xlu0 %2047
  %v2049 = vsel %vm436, %v2013, 0.0
  %2050 = vadd.xlane.f32.xlu0 %v2049
  %v2051 = vpop.xlane.xlu0 %2050
  %v2052 = vsel %vm436, %v2014, 0.0
  %2053 = vadd.xlane.f32.xlu0 %v2052
  %v2054 = vpop.xlane.xlu0 %2053
  %v2055 = vsel %vm436, %v2015, 0.0
  %2056 = vadd.xlane.f32.xlu0 %v2055
  %v2057 = vpop.xlane.xlu0 %2056
  %v2058 = vsel %vm436, %v2016, 0.0
  %2059 = vadd.xlane.f32.xlu0 %v2058
  %v2060 = vpop.xlane.xlu0 %2059
  %v2061 = vsel %vm436, %v2017, 0.0
  %2062 = vadd.xlane.f32.xlu0 %v2061
  %v2063 = vpop.xlane.xlu0 %2062
  %v2064 = vsel %vm436, %v2018, 0.0
  %2065 = vadd.xlane.f32.xlu0 %v2064
  %v2066 = vpop.xlane.xlu0 %2065
  %v2067 = vmul.f32 %v2021, %v485
  %v2068 = vmul.f32 %v2024, %v485
  %v2069 = vmul.f32 %v2027, %v485
  %v2070 = vmul.f32 %v2030, %v485
  %v2071 = vmul.f32 %v2033, %v485
  %v2072 = vmul.f32 %v2036, %v485
  %v2073 = vmul.f32 %v2039, %v485
  %v2074 = vmul.f32 %v2042, %v485
  %v2075 = vmul.f32 %v2045, %v485
  %v2076 = vmul.f32 %v2048, %v485
  %v2077 = vmul.f32 %v2051, %v485
  %v2078 = vmul.f32 %v2054, %v485
  %v2079 = vmul.f32 %v2057, %v485
  %v2080 = vmul.f32 %v2060, %v485
  %v2081 = vmul.f32 %v2063, %v485
  %v2082 = vmul.f32 %v2066, %v485
  %v2083 = vsub.f32 %v2003, %v2067
  %v2084 = vsub.f32 %v2004, %v2068
  %v2085 = vsub.f32 %v2005, %v2069
  %v2086 = vsub.f32 %v2006, %v2070
  %v2087 = vsub.f32 %v2007, %v2071
  %v2088 = vsub.f32 %v2008, %v2072
  %v2089 = vsub.f32 %v2009, %v2073
  %v2090 = vsub.f32 %v2010, %v2074
  %v2091 = vsub.f32 %v2011, %v2075
  %v2092 = vsub.f32 %v2012, %v2076
  %v2093 = vsub.f32 %v2013, %v2077
  %v2094 = vsub.f32 %v2014, %v2078
  %v2095 = vsub.f32 %v2015, %v2079
  %v2096 = vsub.f32 %v2016, %v2080
  %v2097 = vsub.f32 %v2017, %v2081
  %v2098 = vsub.f32 %v2018, %v2082
  %v2099 = vmul.f32 %v2083, %v2083
  %v2100 = vmul.f32 %v2084, %v2084
  %v2101 = vmul.f32 %v2085, %v2085
  %v2102 = vmul.f32 %v2086, %v2086
  %v2103 = vmul.f32 %v2087, %v2087
  %v2104 = vmul.f32 %v2088, %v2088
  %v2105 = vmul.f32 %v2089, %v2089
  %v2106 = vmul.f32 %v2090, %v2090
  %v2107 = vmul.f32 %v2091, %v2091
  %v2108 = vmul.f32 %v2092, %v2092
  %v2109 = vmul.f32 %v2093, %v2093
  %v2110 = vmul.f32 %v2094, %v2094
  %v2111 = vmul.f32 %v2095, %v2095
  %v2112 = vmul.f32 %v2096, %v2096
  %v2113 = vmul.f32 %v2097, %v2097
  %v2114 = vmul.f32 %v2098, %v2098
  %v2115 = vsel %vm436, %v2099, 0.0
  %2116 = vadd.xlane.f32.xlu0 %v2115
  %v2117 = vpop.xlane.xlu0 %2116
  %v2118 = vsel %vm436, %v2100, 0.0
  %2119 = vadd.xlane.f32.xlu0 %v2118
  %v2120 = vpop.xlane.xlu0 %2119
  %v2121 = vsel %vm436, %v2101, 0.0
  %2122 = vadd.xlane.f32.xlu0 %v2121
  %v2123 = vpop.xlane.xlu0 %2122
  %v2124 = vsel %vm436, %v2102, 0.0
  %2125 = vadd.xlane.f32.xlu0 %v2124
  %v2126 = vpop.xlane.xlu0 %2125
  %v2127 = vsel %vm436, %v2103, 0.0
  %2128 = vadd.xlane.f32.xlu0 %v2127
  %v2129 = vpop.xlane.xlu0 %2128
  %v2130 = vsel %vm436, %v2104, 0.0
  %2131 = vadd.xlane.f32.xlu0 %v2130
  %v2132 = vpop.xlane.xlu0 %2131
  %v2133 = vsel %vm436, %v2105, 0.0
  %2134 = vadd.xlane.f32.xlu0 %v2133
  %v2135 = vpop.xlane.xlu0 %2134
  %v2136 = vsel %vm436, %v2106, 0.0
  %2137 = vadd.xlane.f32.xlu0 %v2136
  %v2138 = vpop.xlane.xlu0 %2137
  %v2139 = vsel %vm436, %v2107, 0.0
  %2140 = vadd.xlane.f32.xlu0 %v2139
  %v2141 = vpop.xlane.xlu0 %2140
  %v2142 = vsel %vm436, %v2108, 0.0
  %2143 = vadd.xlane.f32.xlu0 %v2142
  %v2144 = vpop.xlane.xlu0 %2143
  %v2145 = vsel %vm436, %v2109, 0.0
  %2146 = vadd.xlane.f32.xlu0 %v2145
  %v2147 = vpop.xlane.xlu0 %2146
  %v2148 = vsel %vm436, %v2110, 0.0
  %2149 = vadd.xlane.f32.xlu0 %v2148
  %v2150 = vpop.xlane.xlu0 %2149
  %v2151 = vsel %vm436, %v2111, 0.0
  %2152 = vadd.xlane.f32.xlu0 %v2151
  %v2153 = vpop.xlane.xlu0 %2152
  %v2154 = vsel %vm436, %v2112, 0.0
  %2155 = vadd.xlane.f32.xlu0 %v2154
  %v2156 = vpop.xlane.xlu0 %2155
  %v2157 = vsel %vm436, %v2113, 0.0
  %2158 = vadd.xlane.f32.xlu0 %v2157
  %v2159 = vpop.xlane.xlu0 %2158
  %v2160 = vsel %vm436, %v2114, 0.0
  %2161 = vadd.xlane.f32.xlu0 %v2160
  %v2162 = vpop.xlane.xlu0 %2161
  %v2163 = vmul.f32 %v2117, %v485
  %v2164 = vmul.f32 %v2120, %v485
  %v2165 = vmul.f32 %v2123, %v485
  %v2166 = vmul.f32 %v2126, %v485
  %v2167 = vmul.f32 %v2129, %v485
  %v2168 = vmul.f32 %v2132, %v485
  %v2169 = vmul.f32 %v2135, %v485
  %v2170 = vmul.f32 %v2138, %v485
  %v2171 = vmul.f32 %v2141, %v485
  %v2172 = vmul.f32 %v2144, %v485
  %v2173 = vmul.f32 %v2147, %v485
  %v2174 = vmul.f32 %v2150, %v485
  %v2175 = vmul.f32 %v2153, %v485
  %v2176 = vmul.f32 %v2156, %v485
  %v2177 = vmul.f32 %v2159, %v485
  %v2178 = vmul.f32 %v2162, %v485
  %v2179 = vadd.f32 %v2163, 1e-05
  %v2180 = vadd.f32 %v2164, 1e-05
  %v2181 = vadd.f32 %v2165, 1e-05
  %v2182 = vadd.f32 %v2166, 1e-05
  %v2183 = vadd.f32 %v2167, 1e-05
  %v2184 = vadd.f32 %v2168, 1e-05
  %v2185 = vadd.f32 %v2169, 1e-05
  %v2186 = vadd.f32 %v2170, 1e-05
  %v2187 = vadd.f32 %v2171, 1e-05
  %v2188 = vadd.f32 %v2172, 1e-05
  %v2189 = vadd.f32 %v2173, 1e-05
  %v2190 = vadd.f32 %v2174, 1e-05
  %v2191 = vadd.f32 %v2175, 1e-05
  %v2192 = vadd.f32 %v2176, 1e-05
  %v2193 = vadd.f32 %v2177, 1e-05
  %v2194 = vadd.f32 %v2178, 1e-05
  %v2195 = vrsqrt.pop %v2179
  %v2196 = vrsqrt.pop %v2180
  %v2197 = vrsqrt.pop %v2181
  %v2198 = vrsqrt.pop %v2182
  %v2199 = vrsqrt.pop %v2183
  %v2200 = vrsqrt.pop %v2184
  %v2201 = vrsqrt.pop %v2185
  %v2202 = vrsqrt.pop %v2186
  %v2203 = vrsqrt.pop %v2187
  %v2204 = vrsqrt.pop %v2188
  %v2205 = vrsqrt.pop %v2189
  %v2206 = vrsqrt.pop %v2190
  %v2207 = vrsqrt.pop %v2191
  %v2208 = vrsqrt.pop %v2192
  %v2209 = vrsqrt.pop %v2193
  %v2210 = vrsqrt.pop %v2194
  %v2211 = vmul.f32 %v2083, %v2195
  %v2212 = vmul.f32 %v2084, %v2196
  %v2213 = vmul.f32 %v2085, %v2197
  %v2214 = vmul.f32 %v2086, %v2198
  %v2215 = vmul.f32 %v2087, %v2199
  %v2216 = vmul.f32 %v2088, %v2200
  %v2217 = vmul.f32 %v2089, %v2201
  %v2218 = vmul.f32 %v2090, %v2202
  %v2219 = vmul.f32 %v2091, %v2203
  %v2220 = vmul.f32 %v2092, %v2204
  %v2221 = vmul.f32 %v2093, %v2205
  %v2222 = vmul.f32 %v2094, %v2206
  %v2223 = vmul.f32 %v2095, %v2207
  %v2224 = vmul.f32 %v2096, %v2208
  %v2225 = vmul.f32 %v2097, %v2209
  %v2226 = vmul.f32 %v2098, %v2210
  %v2227 = vlaneseq
  %v2228 = vshrl.u32 %v2227, 7
  %v2229 = vsub.s32 2, %v2228
  %v2230 = vrot.slane %v49, %v2229
  %v2231 = vmul.f32 %v2211, %v2230
  %v2232 = vmul.f32 %v2212, %v2230
  %v2233 = vmul.f32 %v2213, %v2230
  %v2234 = vmul.f32 %v2214, %v2230
  %v2235 = vmul.f32 %v2215, %v2230
  %v2236 = vmul.f32 %v2216, %v2230
  %v2237 = vmul.f32 %v2217, %v2230
  %v2238 = vmul.f32 %v2218, %v2230
  %v2239 = vmul.f32 %v2219, %v2230
  %v2240 = vmul.f32 %v2220, %v2230
  %v2241 = vmul.f32 %v2221, %v2230
  %v2242 = vmul.f32 %v2222, %v2230
  %v2243 = vmul.f32 %v2223, %v2230
  %v2244 = vmul.f32 %v2224, %v2230
  %v2245 = vmul.f32 %v2225, %v2230
  %v2246 = vmul.f32 %v2226, %v2230
  %2248 = vrot.lane.b32.xlu0 %v2230, 96
  %v2249 = vpop.permute.xlu0 %2248
  %v2251 = vadd.f32 %v2231, %v2249
  %v2252 = vadd.f32 %v2232, %v2249
  %v2253 = vadd.f32 %v2233, %v2249
  %v2254 = vadd.f32 %v2234, %v2249
  %v2255 = vadd.f32 %v2235, %v2249
  %v2256 = vadd.f32 %v2236, %v2249
  %v2257 = vadd.f32 %v2237, %v2249
  %v2258 = vadd.f32 %v2238, %v2249
  %v2259 = vadd.f32 %v2239, %v2249
  %v2260 = vadd.f32 %v2240, %v2249
  %v2261 = vadd.f32 %v2241, %v2249
  %v2262 = vadd.f32 %v2242, %v2249
  %v2263 = vadd.f32 %v2243, %v2249
  %v2264 = vadd.f32 %v2244, %v2249
  %v2265 = vadd.f32 %v2245, %v2249
  %v2266 = vadd.f32 %v2246, %v2249
  %2283 = vrot.lane.b32.xlu0 %v988, 32
  %v2284 = vpop.permute.xlu0 %2283
  %2285 = vrot.lane.b32.xlu0 %v989, 32
  %v2286 = vpop.permute.xlu0 %2285
  %2287 = vrot.lane.b32.xlu0 %v990, 32
  %v2288 = vpop.permute.xlu0 %2287
  %2289 = vrot.lane.b32.xlu0 %v991, 32
  %v2290 = vpop.permute.xlu0 %2289
  %2291 = vrot.lane.b32.xlu0 %v992, 32
  %v2292 = vpop.permute.xlu0 %2291
  %2293 = vrot.lane.b32.xlu0 %v993, 32
  %v2294 = vpop.permute.xlu0 %2293
  %2295 = vrot.lane.b32.xlu0 %v994, 32
  %v2296 = vpop.permute.xlu0 %2295
  %2297 = vrot.lane.b32.xlu0 %v995, 32
  %v2298 = vpop.permute.xlu0 %2297
  %2299 = vrot.lane.b32.xlu0 %v996, 32
  %v2300 = vpop.permute.xlu0 %2299
  %2301 = vrot.lane.b32.xlu0 %v997, 32
  %v2302 = vpop.permute.xlu0 %2301
  %2303 = vrot.lane.b32.xlu0 %v998, 32
  %v2304 = vpop.permute.xlu0 %2303
  %2305 = vrot.lane.b32.xlu0 %v999, 32
  %v2306 = vpop.permute.xlu0 %2305
  %2307 = vrot.lane.b32.xlu0 %v1000, 32
  %v2308 = vpop.permute.xlu0 %2307
  %2309 = vrot.lane.b32.xlu0 %v1001, 32
  %v2310 = vpop.permute.xlu0 %2309
  %2311 = vrot.lane.b32.xlu0 %v1002, 32
  %v2312 = vpop.permute.xlu0 %2311
  %2313 = vrot.lane.b32.xlu0 %v1003, 32
  %v2314 = vpop.permute.xlu0 %2313
  %v2331 = vsel %vm436, %v2251, %v2284
  %v2332 = vsel %vm436, %v2252, %v2286
  %v2333 = vsel %vm436, %v2253, %v2288
  %v2334 = vsel %vm436, %v2254, %v2290
  %v2335 = vsel %vm436, %v2255, %v2292
  %v2336 = vsel %vm436, %v2256, %v2294
  %v2337 = vsel %vm436, %v2257, %v2296
  %v2338 = vsel %vm436, %v2258, %v2298
  %v2339 = vsel %vm436, %v2259, %v2300
  %v2340 = vsel %vm436, %v2260, %v2302
  %v2341 = vsel %vm436, %v2261, %v2304
  %v2342 = vsel %vm436, %v2262, %v2306
  %v2343 = vsel %vm436, %v2263, %v2308
  %v2344 = vsel %vm436, %v2264, %v2310
  %v2345 = vsel %vm436, %v2265, %v2312
  %v2346 = vsel %vm436, %v2266, %v2314
  %2347 = vst.msk [vmem:[%s4] sm:$0xff] %vm790, %v2331
  %2348 = vst.msk [vmem:[%s4 + $0x8] sm:$0xff] %vm790, %v2332
  %2349 = vst.msk [vmem:[%s4 + $0x10] sm:$0xff] %vm790, %v2333
  %2350 = vst.msk [vmem:[%s4 + $0x18] sm:$0xff] %vm790, %v2334
  %2351 = vst.msk [vmem:[%s4 + $0x20] sm:$0xff] %vm790, %v2335
  %2352 = vst.msk [vmem:[%s4 + $0x28] sm:$0xff] %vm790, %v2336
  %2353 = vst.msk [vmem:[%s4 + $0x30] sm:$0xff] %vm790, %v2337
  %2354 = vst.msk [vmem:[%s4 + $0x38] sm:$0xff] %vm790, %v2338
  %2355 = vst.msk [vmem:[%s4 + $0x40] sm:$0xff] %vm790, %v2339
  %2356 = vst.msk [vmem:[%s4 + $0x48] sm:$0xff] %vm790, %v2340
  %2357 = vst.msk [vmem:[%s4 + $0x50] sm:$0xff] %vm790, %v2341
  %2358 = vst.msk [vmem:[%s4 + $0x58] sm:$0xff] %vm790, %v2342
  %2359 = vst.msk [vmem:[%s4 + $0x60] sm:$0xff] %vm790, %v2343
  %2360 = vst.msk [vmem:[%s4 + $0x68] sm:$0xff] %vm790, %v2344
  %2361 = vst.msk [vmem:[%s4 + $0x70] sm:$0xff] %vm790, %v2345
  %2362 = vst.msk [vmem:[%s4 + $0x78] sm:$0xff] %vm790, %v2346
  // Predicated region
  $region18: #{forward.1} parent=0 // pred_check
    _
  $region19: #{forward.1} parent=0 // pred_check_branch
    %2364 = sbr.rel (0) target = $region21
  $region20: #{forward.1} parent=0 // pred_region
    _
  $region21: #{forward.1} parent=0 // pred_fallthru
    _
  // Predicated region
  $region22: #{forward.1} parent=0 // pred_check
    _
  $region23: #{forward.1} parent=0 // pred_check_branch
    %2366 = sbr.rel (0) target = $region25
  $region24: #{forward.1} parent=0 // pred_region
    _
  $region25: #{forward.1} parent=0 // pred_fallthru
    _

</llo_original>
